<compile_context>
chip_gen: v6e
topology: v6e:2x2x1
jax: 0.10.0
libtpu: 0.0.40
codegen_flags: <defaults>
</compile_context>

<pallas_src>
import numpy as np

import jax
import jax.numpy as jnp
from jax import lax
from jax.experimental import pallas as pl
from jax.experimental.pallas import tpu as pltpu


# --------------------------------------------------------------------------
# Fused ResBlock kernel (single grid step; batch packed along lanes)
# --------------------------------------------------------------------------
def _resblock_kernel(xp_ref, m1_ref, b1_ref, m2_ref, sc_ref, bi_ref, o_ref):
    # xp_ref : (H+2, N*W*Cin) f32   raw input, vertically zero-padded,
    #                               lanes flattened as (n, w, cin)
    # m1_ref : (3*N*W*Cin, N*W*Cmid) bf16  dy-stacked, batch-block-diagonal
    #                                      block-Toeplitz 3x3-conv weights
    # b1_ref : (1, N*W*Cmid) f32    conv1 bias tiled over (n, w)
    # m2_ref : (N*W*Cmid, N*W*Cin) bf16  block-diagonal 1x1-conv weights
    # sc_ref : (1, N*W*Cin) f32     folded eval-mode BN scale, tiled over (n, w)
    # bi_ref : (1, N*W*Cin) f32     folded eval-mode BN bias (incl. conv2 bias)
    # o_ref  : (H, N*W*Cin) f32
    H = o_ref.shape[0]

    xp = xp_ref[...]                                  # (H+2, NWC) f32, raw values
    a = jnp.maximum(xp, 0.01 * xp)                    # LeakyReLU(0.01); pad rows stay 0

    # 3x3 conv (padding=1): lane-concat the 3 dy-shifted slices, one MXU matmul.
    acat = jnp.concatenate([a[0:H, :], a[1:H + 1, :], a[2:H + 2, :]], axis=-1)
    h = jnp.dot(acat.astype(jnp.bfloat16), m1_ref[...],
                preferred_element_type=jnp.float32)   # (H, NWM) f32 accumulation
    h = h + b1_ref[0]
    h = jnp.maximum(h, 0.01 * h)                      # LeakyReLU(0.01)

    # 1x1 conv (block-diagonal matmul) + folded eval-mode BatchNorm affine.
    z = jnp.dot(h.astype(jnp.bfloat16), m2_ref[...],
                preferred_element_type=jnp.float32)   # (H, NWC) f32
    z = z * sc_ref[0] + bi_ref[0]

    # Residual add with the raw (pre-activation) input; 128-lane-dense store.
    o_ref[...] = (z + xp[1:H + 1, :]).astype(o_ref.dtype)


def resblock_forward(x_nchw, ops):
    """x_nchw: (N, Cin, H, W) float32; ops: dict from build_kernel_operands."""
    N, Cin, H, W = x_nchw.shape
    NWC = N * W * Cin                    # packed lane width (n, w, cin)
    NWM = ops["M2"].shape[0]             # N * W * Cmid
    assert ops["M1"].shape == (3 * NWC, NWM), ops["M1"].shape
    assert ops["M2"].shape == (NWM, NWC), ops["M2"].shape

    # NCHW -> lane-packed (H, N*W*Cin), plus the vertical conv padding (one
    # tiny op for the whole fused block; horizontal padding is folded into M1).
    x = jnp.transpose(x_nchw, (2, 0, 3, 1)).reshape(H, NWC)
    xp = jnp.pad(x, ((1, 1), (0, 0)))

    out = pl.pallas_call(
        _resblock_kernel,
        out_shape=jax.ShapeDtypeStruct((H, NWC), jnp.float32),
        grid_spec=pltpu.PrefetchScalarGridSpec(
            num_scalar_prefetch=0,
            grid=(1,),                                    # single fused step
            in_specs=[
                pl.BlockSpec((H + 2, NWC), lambda i: (0, 0)),
                pl.BlockSpec((3 * NWC, NWM), lambda i: (0, 0)),
                pl.BlockSpec((1, NWM), lambda i: (0, 0)),
                pl.BlockSpec((NWM, NWC), lambda i: (0, 0)),
                pl.BlockSpec((1, NWC), lambda i: (0, 0)),
                pl.BlockSpec((1, NWC), lambda i: (0, 0)),
            ],
            out_specs=pl.BlockSpec((H, NWC), lambda i: (0, 0)),
        ),
        compiler_params=pltpu.CompilerParams(
            dimension_semantics=("arbitrary",)),
    )(xp, ops["M1"], ops["b1f"], ops["M2"], ops["scalef"], ops["biasf"])

    out = out.reshape(H, N, W, Cin)
    return jnp.transpose(out, (1, 3, 0, 2))               # back to NCHW


# --------------------------------------------------------------------------
# Parameters (PyTorch-equivalent) and one-time kernel-operand preparation
# --------------------------------------------------------------------------
def init_resblock_params(key, in_channel, channel):
    k1, k2, k3, k4, k5, k6 = jax.random.split(key, 6)
    w1 = jax.random.normal(k1, (3, 3, in_channel, channel), jnp.float32) \
        * (2.0 / (9 * in_channel)) ** 0.5                       # HWIO
    b1 = 0.01 * jax.random.normal(k2, (channel,), jnp.float32)
    w2 = jax.random.normal(k3, (channel, in_channel), jnp.float32) \
        * (2.0 / channel) ** 0.5                                # 1x1 conv as (Cmid, Cin)
    b2 = 0.01 * jax.random.normal(k4, (in_channel,), jnp.float32)
    gamma = 1.0 + 0.1 * jax.random.normal(k5, (in_channel,), jnp.float32)
    beta = 0.1 * jax.random.normal(k6, (in_channel,), jnp.float32)
    return dict(w1=w1, b1=b1, w2=w2, b2=b2, gamma=gamma, beta=beta,
                running_mean=jnp.zeros((in_channel,), jnp.float32),
                running_var=jnp.ones((in_channel,), jnp.float32))


def build_kernel_operands(params, N, W):
    """Fold BN (eval) and build the lane-packed block-Toeplitz / block-diagonal
    weight slabs for a batch of N images of width W (bf16 weights, f32 affines)."""
    eps = 1e-5
    w1 = np.asarray(params["w1"], np.float32)        # (3, 3, Cin, Cmid)
    b1 = np.asarray(params["b1"], np.float32)
    w2 = np.asarray(params["w2"], np.float32)        # (Cmid, Cin)
    b2 = np.asarray(params["b2"], np.float32)
    gamma = np.asarray(params["gamma"], np.float32)
    beta = np.asarray(params["beta"], np.float32)
    mean = np.asarray(params["running_mean"], np.float32)
    var = np.asarray(params["running_var"], np.float32)
    Cin, Cmid = w1.shape[2], w1.shape[3]
    WC, WM = W * Cin, W * Cmid
    NWC, NWM = N * WC, N * WM

    # 3x3 conv, padding=1: per dy tap, a (W*Cin, W*Cmid) block-Toeplitz matrix.
    # Horizontal zero-padding == dropped blocks.
    M1 = np.zeros((3, WC, WM), np.float32)
    for dy in range(3):
        for dx in range(3):
            for wo in range(W):
                wi = wo + dx - 1
                if 0 <= wi < W:
                    M1[dy, wi * Cin:(wi + 1) * Cin, wo * Cmid:(wo + 1) * Cmid] = w1[dy, dx]

    # Batch-block-diagonal expansion (N images packed along lanes), then stack
    # the 3 dy taps along K so conv1 is a single matmul.
    M1p = np.zeros((3, NWC, NWM), np.float32)
    for n in range(N):
        M1p[:, n * WC:(n + 1) * WC, n * WM:(n + 1) * WM] = M1
    M1cat = M1p.reshape(3 * NWC, NWM)

    # 1x1 conv as a block-diagonal (N*W*Cmid, N*W*Cin) matmul.
    M2 = np.zeros((WM, WC), np.float32)
    for wo in range(W):
        M2[wo * Cmid:(wo + 1) * Cmid, wo * Cin:(wo + 1) * Cin] = w2
    M2p = np.zeros((NWM, NWC), np.float32)
    for n in range(N):
        M2p[n * WM:(n + 1) * WM, n * WC:(n + 1) * WC] = M2

    # Eval-mode BatchNorm fold (conv2 bias absorbed into the BN bias).
    scale = gamma / np.sqrt(var + eps)
    bias = beta + (b2 - mean) * scale

    return dict(
        M1=jnp.asarray(M1cat, jnp.bfloat16),
        b1f=jnp.asarray(np.tile(b1, N * W)[None, :], jnp.float32),
        M2=jnp.asarray(M2p, jnp.bfloat16),
        scalef=jnp.asarray(np.tile(scale, N * W)[None, :], jnp.float32),
        biasf=jnp.asarray(np.tile(bias, N * W)[None, :], jnp.float32),
    )


# --------------------------------------------------------------------------
# Pure-JAX reference (same bf16 operand truncation, f32 accumulation)
# --------------------------------------------------------------------------
def _leaky(t):
    return jnp.maximum(t, 0.01 * t)


def resblock_reference(x_nchw, params):
    eps = 1e-5
    x = jnp.transpose(x_nchw, (0, 2, 3, 1))                     # NHWC
    a = _leaky(x)
    h = lax.conv_general_dilated(
        a.astype(jnp.bfloat16), params["w1"].astype(jnp.bfloat16), (1, 1), "SAME",
        dimension_numbers=("NHWC", "HWIO", "NHWC"),
        preferred_element_type=jnp.float32) + params["b1"]
    h = _leaky(h)
    z = jnp.einsum("nhwm,mc->nhwc", h.astype(jnp.bfloat16),
                   params["w2"].astype(jnp.bfloat16),
                   preferred_element_type=jnp.float32) + params["b2"]
    z = (z - params["running_mean"]) * (
        params["gamma"] / jnp.sqrt(params["running_var"] + eps)) + params["beta"]
    y = z + x                                                   # residual
    return jnp.transpose(y, (0, 3, 1, 2))                       # NCHW


if __name__ == "__main__":
    # Small shapes consistent with the module: batch=2, in_channel=4,
    # hidden channel=32, spatial 16x16.
    key = jax.random.PRNGKey(0)
    key, kx = jax.random.split(key)
    N, in_channel, channel, H, W = 2, 4, 32, 16, 16
    x = jax.random.normal(kx, (N, in_channel, H, W), jnp.float32)   # NCHW

    params = init_resblock_params(key, in_channel, channel)
    ops = build_kernel_operands(params, N, W)

    out = jax.block_until_ready(resblock_forward(x, ops))
    assert out.shape == (N, in_channel, H, W), out.shape

    ref = jax.block_until_ready(resblock_reference(x, params))
    err = float(jnp.max(jnp.abs(out - ref)))
    assert jnp.allclose(out, ref, rtol=2e-3, atol=2e-3), err

    print("KERNEL_OK")
</pallas_src>

<mosaic_0001>
module attributes {stable_mosaic.version = 11 : i64} {
  func.func @_resblock_kernel(%arg0: i32, %arg1: memref<18x128xf32, #tpu.memory_space<vmem>>, %arg2: memref<384x1024xbf16, #tpu.memory_space<vmem>>, %arg3: memref<1x1024xf32, #tpu.memory_space<vmem>>, %arg4: memref<1024x128xbf16, #tpu.memory_space<vmem>>, %arg5: memref<1x128xf32, #tpu.memory_space<vmem>>, %arg6: memref<1x128xf32, #tpu.memory_space<vmem>>, %arg7: memref<16x128xf32, #tpu.memory_space<vmem>>) attributes {dimension_semantics = [#tpu.dimension_semantics<arbitrary>], iteration_bounds = array<i64: 1>, scalar_prefetch = 0 : i64, scratch_operands = 0 : i64, tpu.core_type = #tpu.core_type<tc>, window_params = [{pipeline_mode = #tpu.pipeline_mode<synchronous>, transform_indices = @transform_0, window_bounds = array<i64: 18, 128>}, {pipeline_mode = #tpu.pipeline_mode<synchronous>, transform_indices = @transform_1, window_bounds = array<i64: 384, 1024>}, {pipeline_mode = #tpu.pipeline_mode<synchronous>, transform_indices = @transform_2, window_bounds = array<i64: 1, 1024>}, {pipeline_mode = #tpu.pipeline_mode<synchronous>, transform_indices = @transform_3, window_bounds = array<i64: 1024, 128>}, {pipeline_mode = #tpu.pipeline_mode<synchronous>, transform_indices = @transform_4, window_bounds = array<i64: 1, 128>}, {pipeline_mode = #tpu.pipeline_mode<synchronous>, transform_indices = @transform_5, window_bounds = array<i64: 1, 128>}, {pipeline_mode = #tpu.pipeline_mode<synchronous>, transform_indices = @transform_6, window_bounds = array<i64: 16, 128>}]} {
    %c0 = arith.constant 0 : index
    %c0_0 = arith.constant 0 : index
    %0 = vector.load %arg1[%c0, %c0_0] : memref<18x128xf32, #tpu.memory_space<vmem>>, vector<18x128xf32>
    %cst = arith.constant 0.00999999977 : f32
    %1 = vector.broadcast %cst : f32 to vector<18x128xf32>
    %2 = arith.mulf %1, %0 : vector<18x128xf32>
    %3 = arith.maximumf %0, %2 : vector<18x128xf32>
    %4 = vector.extract_strided_slice %3 {offsets = [0, 0], sizes = [16, 128], strides = [1, 1]} : vector<18x128xf32> to vector<16x128xf32>
    %5 = vector.extract_strided_slice %3 {offsets = [1, 0], sizes = [16, 128], strides = [1, 1]} : vector<18x128xf32> to vector<16x128xf32>
    %6 = vector.extract_strided_slice %3 {offsets = [2, 0], sizes = [16, 128], strides = [1, 1]} : vector<18x128xf32> to vector<16x128xf32>
    %7 = tpu.concatenate %4, %5, %6 in 1 : vector<16x128xf32>, vector<16x128xf32>, vector<16x128xf32> -> vector<16x384xf32>
    %8 = arith.truncf %7 : vector<16x384xf32> to vector<16x384xbf16>
    %c0_1 = arith.constant 0 : index
    %c0_2 = arith.constant 0 : index
    %9 = vector.load %arg2[%c0_1, %c0_2] : memref<384x1024xbf16, #tpu.memory_space<vmem>>, vector<384x1024xbf16>
    %cst_3 = arith.constant dense<0.000000e+00> : vector<16x1024xf32>
    %10 = tpu.matmul %8, %9, %cst_3 {dimension_numbers = #tpu.dot_dimension_numbers<[1], [0], [0], [1], [0, 0, 1, 1], [], []>} : vector<16x384xbf16>, vector<384x1024xbf16>, vector<16x1024xf32> -> vector<16x1024xf32>
    %c0_4 = arith.constant 0 : index
    %c0_5 = arith.constant 0 : index
    %11 = vector.load %arg3[%c0_4, %c0_5] : memref<1x1024xf32, #tpu.memory_space<vmem>>, vector<1x1024xf32>
    %12 = vector.shape_cast %11 : vector<1x1024xf32> to vector<1024xf32>
    %13 = vector.shape_cast %12 : vector<1024xf32> to vector<1x1024xf32>
    %14 = vector.broadcast %13 : vector<1x1024xf32> to vector<16x1024xf32>
    %15 = arith.addf %10, %14 : vector<16x1024xf32>
    %cst_6 = arith.constant 0.00999999977 : f32
    %16 = vector.broadcast %cst_6 : f32 to vector<16x1024xf32>
    %17 = arith.mulf %16, %15 : vector<16x1024xf32>
    %18 = arith.maximumf %15, %17 : vector<16x1024xf32>
    %19 = arith.truncf %18 : vector<16x1024xf32> to vector<16x1024xbf16>
    %c0_7 = arith.constant 0 : index
    %c0_8 = arith.constant 0 : index
    %20 = vector.load %arg4[%c0_7, %c0_8] : memref<1024x128xbf16, #tpu.memory_space<vmem>>, vector<1024x128xbf16>
    %cst_9 = arith.constant dense<0.000000e+00> : vector<16x128xf32>
    %21 = tpu.matmul %19, %20, %cst_9 {dimension_numbers = #tpu.dot_dimension_numbers<[1], [0], [0], [1], [0, 0, 1, 1], [], []>} : vector<16x1024xbf16>, vector<1024x128xbf16>, vector<16x128xf32> -> vector<16x128xf32>
    %c0_10 = arith.constant 0 : index
    %c0_11 = arith.constant 0 : index
    %22 = vector.load %arg5[%c0_10, %c0_11] : memref<1x128xf32, #tpu.memory_space<vmem>>, vector<1x128xf32>
    %23 = vector.shape_cast %22 : vector<1x128xf32> to vector<128xf32>
    %24 = vector.shape_cast %23 : vector<128xf32> to vector<1x128xf32>
    %25 = vector.broadcast %24 : vector<1x128xf32> to vector<16x128xf32>
    %26 = arith.mulf %21, %25 : vector<16x128xf32>
    %c0_12 = arith.constant 0 : index
    %c0_13 = arith.constant 0 : index
    %27 = vector.load %arg6[%c0_12, %c0_13] : memref<1x128xf32, #tpu.memory_space<vmem>>, vector<1x128xf32>
    %28 = vector.shape_cast %27 : vector<1x128xf32> to vector<128xf32>
    %29 = vector.shape_cast %28 : vector<128xf32> to vector<1x128xf32>
    %30 = vector.broadcast %29 : vector<1x128xf32> to vector<16x128xf32>
    %31 = arith.addf %26, %30 : vector<16x128xf32>
    %32 = vector.extract_strided_slice %0 {offsets = [1, 0], sizes = [16, 128], strides = [1, 1]} : vector<18x128xf32> to vector<16x128xf32>
    %33 = arith.addf %31, %32 : vector<16x128xf32>
    %c0_14 = arith.constant 0 : index
    %c0_15 = arith.constant 0 : index
    %34 = vector.load %arg7[%c0_14, %c0_15] : memref<16x128xf32, #tpu.memory_space<vmem>>, vector<16x128xf32>
    tpu.vector_store %arg7[%c0_14, %c0_15], %33 {strides = array<i32>} : memref<16x128xf32, #tpu.memory_space<vmem>>, vector<16x128xf32>,
    return
  }
  func.func @transform_0(%arg0: i32) -> (i32, i32) {
    %c0_i32 = arith.constant 0 : i32
    %c0_i32_0 = arith.constant 0 : i32
    %c0_i32_1 = arith.constant 0 : i32
    return %c0_i32, %c0_i32_0 : i32, i32
  }
  func.func @transform_1(%arg0: i32) -> (i32, i32) {
    %c0_i32 = arith.constant 0 : i32
    %c0_i32_0 = arith.constant 0 : i32
    %c0_i32_1 = arith.constant 0 : i32
    return %c0_i32, %c0_i32_0 : i32, i32
  }
  func.func @transform_2(%arg0: i32) -> (i32, i32) {
    %c0_i32 = arith.constant 0 : i32
    %c0_i32_0 = arith.constant 0 : i32
    %c0_i32_1 = arith.constant 0 : i32
    return %c0_i32, %c0_i32_0 : i32, i32
  }
  func.func @transform_3(%arg0: i32) -> (i32, i32) {
    %c0_i32 = arith.constant 0 : i32
    %c0_i32_0 = arith.constant 0 : i32
    %c0_i32_1 = arith.constant 0 : i32
    return %c0_i32, %c0_i32_0 : i32, i32
  }
  func.func @transform_4(%arg0: i32) -> (i32, i32) {
    %c0_i32 = arith.constant 0 : i32
    %c0_i32_0 = arith.constant 0 : i32
    %c0_i32_1 = arith.constant 0 : i32
    return %c0_i32, %c0_i32_0 : i32, i32
  }
  func.func @transform_5(%arg0: i32) -> (i32, i32) {
    %c0_i32 = arith.constant 0 : i32
    %c0_i32_0 = arith.constant 0 : i32
    %c0_i32_1 = arith.constant 0 : i32
    return %c0_i32, %c0_i32_0 : i32, i32
  }
  func.func @transform_6(%arg0: i32) -> (i32, i32) {
    %c0_i32 = arith.constant 0 : i32
    %c0_i32_0 = arith.constant 0 : i32
    %c0_i32_1 = arith.constant 0 : i32
    return %c0_i32, %c0_i32_0 : i32, i32
  }
}

</mosaic_0001>

<llo_original>
// kernel: tpu_custom_call.1
$region0: #{tpu_custom_call.1}
  #allocation0 [shape = 'u32[]', space=smem, size = 0x4, offset = 0x4, fixed_abs, tag = 'smem constant byte address 0x4 - core index']
  #allocation1 [shape = 'u32[144,128]{1,0:T(1,128)}', space=vmem, size = 0x12000, scoped, tag = 'internal scratch']
  %s0 = inlined_call_operand.hbm [shape: f32[18,128], index: 0, kind: input, shape index: {}]
  %s1 = inlined_call_operand.hbm [shape: bf16[384,1024], index: 1, kind: input, shape index: {}]
  %s2 = inlined_call_operand.hbm [shape: f32[1,1024], index: 2, kind: input, shape index: {}]
  %s3 = inlined_call_operand.hbm [shape: bf16[1024,128], index: 3, kind: input, shape index: {}]
  %s4 = inlined_call_operand.vmem [shape: f32[1,128], index: 4, kind: input, shape index: {}]
  %s5 = inlined_call_operand.vmem [shape: f32[1,128], index: 5, kind: input, shape index: {}]
  %s6 = inlined_call_operand.hbm [shape: f32[16,128], index: 6, kind: output, shape index: {}]
  %s7 = sld [smem:[#allocation0]]
  $region50: #{tpu_custom_call.1} parent=0
    _
  %s9 = ssub.s32 1, %s7
  %s10 = scalar_select 0, %s9, %s7
  $region1: #{tpu_custom_call.1} parent=0
    #allocation2 [shape = 'u8[12288]{0}', space=vmem, size = 0x3000, scoped, tag = 'input window, operand 0, single buffered']
    #allocation3 [shape = 's32[1]{0}', space=sflag, size = 0x4, scoped, tag = 'scoped memory for tpu_custom_call.1']
    #allocation4 [shape = 's32[1]{0}', space=sflag, size = 0x4, scoped, tag = 'scoped memory for tpu_custom_call.1']
    #allocation5 [shape = 'u8[786432]{0}', space=vmem, size = 0xc0000, scoped, tag = 'input window, operand 1, single buffered']
    #allocation6 [shape = 's32[1]{0}', space=sflag, size = 0x4, scoped, tag = 'scoped memory for tpu_custom_call.1']
    #allocation7 [shape = 'u8[4096]{0}', space=vmem, size = 0x1000, scoped, tag = 'input window, operand 2, single buffered']
    #allocation8 [shape = 'u8[262144]{0}', space=vmem, size = 0x40000, scoped, tag = 'input window, operand 3, single buffered']
    #allocation9 [shape = 's32[1]{0}', space=sflag, size = 0x4, scoped, tag = 'scoped memory for tpu_custom_call.1']
    #allocation10 [shape = 'u8[8192]{0}', space=vmem, size = 0x2000, scoped, tag = 'output window, operand 0, single buffered']
    %11 = vsyncpa [#allocation3], 0
    %12 = vsyncpa [#allocation6], 0
    %13 = vsyncpa [#allocation9], 0
    %14 = vsyncpa [#allocation4], 0
    // Predicated region
    $region2: #{tpu_custom_call.1} parent=1 // pred_check
      _
    $region3: #{tpu_custom_call.1} parent=1 // pred_check_branch
      %16 = sbr.rel (0) target = $region5
    $region4: #{tpu_custom_call.1} parent=1 // pred_region
      %s18 = ssub.s32 384, 384
      %19 = vsyncadd [#allocation3], %s18
      %s20 = sshll.u32 [#allocation2], 4
      %s21 = int_to_ptr.vmem [resolvable:$true] %s20
      %26 = dma.hbm_to_vmem [thread:$0]  %s0, 384, %s21, [#allocation3], 128, 128, 8
    $region5: #{tpu_custom_call.1} parent=1 // pred_fallthru
      _
    // Predicated region
    $region6: #{tpu_custom_call.1} parent=1 // pred_check
      _
    $region7: #{tpu_custom_call.1} parent=1 // pred_check_branch
      %28 = sbr.rel (0) target = $region9
    $region8: #{tpu_custom_call.1} parent=1 // pred_region
      %s30 = ssub.s32 24576, 24576
      %31 = vsyncadd [#allocation6], %s30
      %s32 = sshll.u32 [#allocation5], 4
      %s33 = int_to_ptr.vmem [resolvable:$true] %s32
      %38 = dma.hbm_to_vmem [thread:$0]  %s1, 24576, %s33, [#allocation6], 512, 512, 32
    $region9: #{tpu_custom_call.1} parent=1 // pred_fallthru
      _
    // Predicated region
    $region10: #{tpu_custom_call.1} parent=1 // pred_check
      _
    $region11: #{tpu_custom_call.1} parent=1 // pred_check_branch
      %40 = sbr.rel (0) target = $region13
    $region12: #{tpu_custom_call.1} parent=1 // pred_region
      %s42 = ssub.s32 128, 128
      %43 = vsyncadd [#allocation6], %s42
      %s45 = sshll.u32 [#allocation7], 4
      %s46 = int_to_ptr.vmem [resolvable:$true] %s45
      %48 = dma.hbm_to_vmem [thread:$0]  %s2, 128, %s46, [#allocation6]
    $region13: #{tpu_custom_call.1} parent=1 // pred_fallthru
      _
    // Predicated region
    $region14: #{tpu_custom_call.1} parent=1 // pred_check
      _
    $region15: #{tpu_custom_call.1} parent=1 // pred_check_branch
      %50 = sbr.rel (0) target = $region17
    $region16: #{tpu_custom_call.1} parent=1 // pred_region
      %s52 = ssub.s32 8192, 8192
      %53 = vsyncadd [#allocation9], %s52
      %s54 = sshll.u32 [#allocation8], 4
      %s55 = int_to_ptr.vmem [resolvable:$true] %s54
      %60 = dma.hbm_to_vmem [thread:$0]  %s3, 8192, %s55, [#allocation9], 64, 64, 4
    $region17: #{tpu_custom_call.1} parent=1 // pred_fallthru
      _
    // Predicated region
    $region18: #{tpu_custom_call.1} parent=1 // pred_check
      _
    $region19: #{tpu_custom_call.1} parent=1 // pred_check_branch
      %62 = sbr.rel (0) target = $region21
    $region20: #{tpu_custom_call.1} parent=1 // pred_region
      _
    $region21: #{tpu_custom_call.1} parent=1 // pred_fallthru
      _
    // Predicated region
    $region22: #{tpu_custom_call.1} parent=1 // pred_check
      _
    $region23: #{tpu_custom_call.1} parent=1 // pred_check_branch
      %64 = sbr.rel (0) target = $region25
    $region24: #{tpu_custom_call.1} parent=1 // pred_region
      _
    $region25: #{tpu_custom_call.1} parent=1 // pred_fallthru
      _
    // Predicated region
    $region26: #{tpu_custom_call.1} parent=1 // pred_check
      _
    $region27: #{tpu_custom_call.1} parent=1 // pred_check_branch
      %66 = sbr.rel (0) target = $region29
    $region28: #{tpu_custom_call.1} parent=1 // pred_region
      %67 = dma.done [#allocation3], 384
    $region29: #{tpu_custom_call.1} parent=1 // pred_fallthru
      _
    // Predicated region
    $region30: #{tpu_custom_call.1} parent=1 // pred_check
      _
    $region31: #{tpu_custom_call.1} parent=1 // pred_check_branch
      %69 = sbr.rel (0) target = $region33
    $region32: #{tpu_custom_call.1} parent=1 // pred_region
      %70 = dma.done [#allocation6], 24576
    $region33: #{tpu_custom_call.1} parent=1 // pred_fallthru
      _
    // Predicated region
    $region34: #{tpu_custom_call.1} parent=1 // pred_check
      _
    $region35: #{tpu_custom_call.1} parent=1 // pred_check_branch
      %72 = sbr.rel (0) target = $region37
    $region36: #{tpu_custom_call.1} parent=1 // pred_region
      %73 = dma.done [#allocation6], 128
    $region37: #{tpu_custom_call.1} parent=1 // pred_fallthru
      _
    // Predicated region
    $region38: #{tpu_custom_call.1} parent=1 // pred_check
      _
    $region39: #{tpu_custom_call.1} parent=1 // pred_check_branch
      %75 = sbr.rel (0) target = $region41
    $region40: #{tpu_custom_call.1} parent=1 // pred_region
      %76 = dma.done [#allocation9], 8192
    $region41: #{tpu_custom_call.1} parent=1 // pred_fallthru
      _
    %v78 = vld [vmem:[#allocation2] sm:$0xff]
    %v79 = vld [vmem:[#allocation2 + $0x8] sm:$0xff]
    %v80 = vld [vmem:[#allocation2 + $0x10] sm:$0x3]
    %v81 = vmul.f32 %v78, 0.01
    %v82 = vmul.f32 %v79, 0.01
    %v83 = vmul.f32 %v80, 0.01
    %v84 = vmax.f32 %v78, %v81
    %v85 = vmax.f32 %v79, %v82
    %v86 = vmax.f32 %v80, %v83
    %vm90 = vcmask 1046528
    %v91 = vrot.slane %v84, 1
    %v92 = vrot.slane %v85, 1
    %v93 = vsel %vm90, %v91, %v92
    %v94 = vrot.slane %v86, 1
    %v95 = vsel %vm90, %v92, %v94
    %vm98 = vcmask 1045504
    %v99 = vrot.slane %v84, 2
    %v100 = vrot.slane %v85, 2
    %v101 = vsel %vm98, %v99, %v100
    %v102 = vrot.slane %v86, 2
    %v103 = vsel %vm98, %v100, %v102
    %v106 = vpack.c.bf16 %v85, %v84
    %v107 = vpack.c.bf16 %v95, %v93
    %v108 = vpack.c.bf16 %v103, %v101
    %v109 = vld [vmem:[#allocation5] sm:$0xff]
    %v110 = vld [vmem:[#allocation5 + $0x8] sm:$0xff]
    %v111 = vld [vmem:[#allocation5 + $0x10] sm:$0xff]
    %v112 = vld [vmem:[#allocation5 + $0x18] sm:$0xff]
    %v113 = vld [vmem:[#allocation5 + $0x20] sm:$0xff]
    %v114 = vld [vmem:[#allocation5 + $0x28] sm:$0xff]
    %v115 = vld [vmem:[#allocation5 + $0x30] sm:$0xff]
    %v116 = vld [vmem:[#allocation5 + $0x38] sm:$0xff]
    %v117 = vld [vmem:[#allocation5 + $0x40] sm:$0xff]
    %v118 = vld [vmem:[#allocation5 + $0x48] sm:$0xff]
    %v119 = vld [vmem:[#allocation5 + $0x50] sm:$0xff]
    %v120 = vld [vmem:[#allocation5 + $0x58] sm:$0xff]
    %v121 = vld [vmem:[#allocation5 + $0x60] sm:$0xff]
    %v122 = vld [vmem:[#allocation5 + $0x68] sm:$0xff]
    %v123 = vld [vmem:[#allocation5 + $0x70] sm:$0xff]
    %v124 = vld [vmem:[#allocation5 + $0x78] sm:$0xff]
    %v125 = vld [vmem:[#allocation5 + $0x80] sm:$0xff]
    %v126 = vld [vmem:[#allocation5 + $0x88] sm:$0xff]
    %v127 = vld [vmem:[#allocation5 + $0x90] sm:$0xff]
    %v128 = vld [vmem:[#allocation5 + $0x98] sm:$0xff]
    %v129 = vld [vmem:[#allocation5 + $0xa0] sm:$0xff]
    %v130 = vld [vmem:[#allocation5 + $0xa8] sm:$0xff]
    %v131 = vld [vmem:[#allocation5 + $0xb0] sm:$0xff]
    %v132 = vld [vmem:[#allocation5 + $0xb8] sm:$0xff]
    %v133 = vld [vmem:[#allocation5 + $0xc0] sm:$0xff]
    %v134 = vld [vmem:[#allocation5 + $0xc8] sm:$0xff]
    %v135 = vld [vmem:[#allocation5 + $0xd0] sm:$0xff]
    %v136 = vld [vmem:[#allocation5 + $0xd8] sm:$0xff]
    %v137 = vld [vmem:[#allocation5 + $0xe0] sm:$0xff]
    %v138 = vld [vmem:[#allocation5 + $0xe8] sm:$0xff]
    %v139 = vld [vmem:[#allocation5 + $0xf0] sm:$0xff]
    %v140 = vld [vmem:[#allocation5 + $0xf8] sm:$0xff]
    %v141 = vld [vmem:[#allocation5 + $0x100] sm:$0xff]
    %v142 = vld [vmem:[#allocation5 + $0x108] sm:$0xff]
    %v143 = vld [vmem:[#allocation5 + $0x110] sm:$0xff]
    %v144 = vld [vmem:[#allocation5 + $0x118] sm:$0xff]
    %v145 = vld [vmem:[#allocation5 + $0x120] sm:$0xff]
    %v146 = vld [vmem:[#allocation5 + $0x128] sm:$0xff]
    %v147 = vld [vmem:[#allocation5 + $0x130] sm:$0xff]
    %v148 = vld [vmem:[#allocation5 + $0x138] sm:$0xff]
    %v149 = vld [vmem:[#allocation5 + $0x140] sm:$0xff]
    %v150 = vld [vmem:[#allocation5 + $0x148] sm:$0xff]
    %v151 = vld [vmem:[#allocation5 + $0x150] sm:$0xff]
    %v152 = vld [vmem:[#allocation5 + $0x158] sm:$0xff]
    %v153 = vld [vmem:[#allocation5 + $0x160] sm:$0xff]
    %v154 = vld [vmem:[#allocation5 + $0x168] sm:$0xff]
    %v155 = vld [vmem:[#allocation5 + $0x170] sm:$0xff]
    %v156 = vld [vmem:[#allocation5 + $0x178] sm:$0xff]
    %v157 = vld [vmem:[#allocation5 + $0x180] sm:$0xff]
    %v158 = vld [vmem:[#allocation5 + $0x188] sm:$0xff]
    %v159 = vld [vmem:[#allocation5 + $0x190] sm:$0xff]
    %v160 = vld [vmem:[#allocation5 + $0x198] sm:$0xff]
    %v161 = vld [vmem:[#allocation5 + $0x1a0] sm:$0xff]
    %v162 = vld [vmem:[#allocation5 + $0x1a8] sm:$0xff]
    %v163 = vld [vmem:[#allocation5 + $0x1b0] sm:$0xff]
    %v164 = vld [vmem:[#allocation5 + $0x1b8] sm:$0xff]
    %v165 = vld [vmem:[#allocation5 + $0x1c0] sm:$0xff]
    %v166 = vld [vmem:[#allocation5 + $0x1c8] sm:$0xff]
    %v167 = vld [vmem:[#allocation5 + $0x1d0] sm:$0xff]
    %v168 = vld [vmem:[#allocation5 + $0x1d8] sm:$0xff]
    %v169 = vld [vmem:[#allocation5 + $0x1e0] sm:$0xff]
    %v170 = vld [vmem:[#allocation5 + $0x1e8] sm:$0xff]
    %v171 = vld [vmem:[#allocation5 + $0x1f0] sm:$0xff]
    %v172 = vld [vmem:[#allocation5 + $0x1f8] sm:$0xff]
    %v173 = vld [vmem:[#allocation5 + $0x200] sm:$0xff]
    %v174 = vld [vmem:[#allocation5 + $0x208] sm:$0xff]
    %v175 = vld [vmem:[#allocation5 + $0x210] sm:$0xff]
    %v176 = vld [vmem:[#allocation5 + $0x218] sm:$0xff]
    %v177 = vld [vmem:[#allocation5 + $0x220] sm:$0xff]
    %v178 = vld [vmem:[#allocation5 + $0x228] sm:$0xff]
    %v179 = vld [vmem:[#allocation5 + $0x230] sm:$0xff]
    %v180 = vld [vmem:[#allocation5 + $0x238] sm:$0xff]
    %v181 = vld [vmem:[#allocation5 + $0x240] sm:$0xff]
    %v182 = vld [vmem:[#allocation5 + $0x248] sm:$0xff]
    %v183 = vld [vmem:[#allocation5 + $0x250] sm:$0xff]
    %v184 = vld [vmem:[#allocation5 + $0x258] sm:$0xff]
    %v185 = vld [vmem:[#allocation5 + $0x260] sm:$0xff]
    %v186 = vld [vmem:[#allocation5 + $0x268] sm:$0xff]
    %v187 = vld [vmem:[#allocation5 + $0x270] sm:$0xff]
    %v188 = vld [vmem:[#allocation5 + $0x278] sm:$0xff]
    %v189 = vld [vmem:[#allocation5 + $0x280] sm:$0xff]
    %v190 = vld [vmem:[#allocation5 + $0x288] sm:$0xff]
    %v191 = vld [vmem:[#allocation5 + $0x290] sm:$0xff]
    %v192 = vld [vmem:[#allocation5 + $0x298] sm:$0xff]
    %v193 = vld [vmem:[#allocation5 + $0x2a0] sm:$0xff]
    %v194 = vld [vmem:[#allocation5 + $0x2a8] sm:$0xff]
    %v195 = vld [vmem:[#allocation5 + $0x2b0] sm:$0xff]
    %v196 = vld [vmem:[#allocation5 + $0x2b8] sm:$0xff]
    %v197 = vld [vmem:[#allocation5 + $0x2c0] sm:$0xff]
    %v198 = vld [vmem:[#allocation5 + $0x2c8] sm:$0xff]
    %v199 = vld [vmem:[#allocation5 + $0x2d0] sm:$0xff]
    %v200 = vld [vmem:[#allocation5 + $0x2d8] sm:$0xff]
    %v201 = vld [vmem:[#allocation5 + $0x2e0] sm:$0xff]
    %v202 = vld [vmem:[#allocation5 + $0x2e8] sm:$0xff]
    %v203 = vld [vmem:[#allocation5 + $0x2f0] sm:$0xff]
    %v204 = vld [vmem:[#allocation5 + $0x2f8] sm:$0xff]
    %v205 = vld [vmem:[#allocation5 + $0x300] sm:$0xff]
    %v206 = vld [vmem:[#allocation5 + $0x308] sm:$0xff]
    %v207 = vld [vmem:[#allocation5 + $0x310] sm:$0xff]
    %v208 = vld [vmem:[#allocation5 + $0x318] sm:$0xff]
    %v209 = vld [vmem:[#allocation5 + $0x320] sm:$0xff]
    %v210 = vld [vmem:[#allocation5 + $0x328] sm:$0xff]
    %v211 = vld [vmem:[#allocation5 + $0x330] sm:$0xff]
    %v212 = vld [vmem:[#allocation5 + $0x338] sm:$0xff]
    %v213 = vld [vmem:[#allocation5 + $0x340] sm:$0xff]
    %v214 = vld [vmem:[#allocation5 + $0x348] sm:$0xff]
    %v215 = vld [vmem:[#allocation5 + $0x350] sm:$0xff]
    %v216 = vld [vmem:[#allocation5 + $0x358] sm:$0xff]
    %v217 = vld [vmem:[#allocation5 + $0x360] sm:$0xff]
    %v218 = vld [vmem:[#allocation5 + $0x368] sm:$0xff]
    %v219 = vld [vmem:[#allocation5 + $0x370] sm:$0xff]
    %v220 = vld [vmem:[#allocation5 + $0x378] sm:$0xff]
    %v221 = vld [vmem:[#allocation5 + $0x380] sm:$0xff]
    %v222 = vld [vmem:[#allocation5 + $0x388] sm:$0xff]
    %v223 = vld [vmem:[#allocation5 + $0x390] sm:$0xff]
    %v224 = vld [vmem:[#allocation5 + $0x398] sm:$0xff]
    %v225 = vld [vmem:[#allocation5 + $0x3a0] sm:$0xff]
    %v226 = vld [vmem:[#allocation5 + $0x3a8] sm:$0xff]
    %v227 = vld [vmem:[#allocation5 + $0x3b0] sm:$0xff]
    %v228 = vld [vmem:[#allocation5 + $0x3b8] sm:$0xff]
    %v229 = vld [vmem:[#allocation5 + $0x3c0] sm:$0xff]
    %v230 = vld [vmem:[#allocation5 + $0x3c8] sm:$0xff]
    %v231 = vld [vmem:[#allocation5 + $0x3d0] sm:$0xff]
    %v232 = vld [vmem:[#allocation5 + $0x3d8] sm:$0xff]
    %v233 = vld [vmem:[#allocation5 + $0x3e0] sm:$0xff]
    %v234 = vld [vmem:[#allocation5 + $0x3e8] sm:$0xff]
    %v235 = vld [vmem:[#allocation5 + $0x3f0] sm:$0xff]
    %v236 = vld [vmem:[#allocation5 + $0x3f8] sm:$0xff]
    %v237 = vld [vmem:[#allocation5 + $0x400] sm:$0xff]
    %v238 = vld [vmem:[#allocation5 + $0x408] sm:$0xff]
    %v239 = vld [vmem:[#allocation5 + $0x410] sm:$0xff]
    %v240 = vld [vmem:[#allocation5 + $0x418] sm:$0xff]
    %v241 = vld [vmem:[#allocation5 + $0x420] sm:$0xff]
    %v242 = vld [vmem:[#allocation5 + $0x428] sm:$0xff]
    %v243 = vld [vmem:[#allocation5 + $0x430] sm:$0xff]
    %v244 = vld [vmem:[#allocation5 + $0x438] sm:$0xff]
    %v245 = vld [vmem:[#allocation5 + $0x440] sm:$0xff]
    %v246 = vld [vmem:[#allocation5 + $0x448] sm:$0xff]
    %v247 = vld [vmem:[#allocation5 + $0x450] sm:$0xff]
    %v248 = vld [vmem:[#allocation5 + $0x458] sm:$0xff]
    %v249 = vld [vmem:[#allocation5 + $0x460] sm:$0xff]
    %v250 = vld [vmem:[#allocation5 + $0x468] sm:$0xff]
    %v251 = vld [vmem:[#allocation5 + $0x470] sm:$0xff]
    %v252 = vld [vmem:[#allocation5 + $0x478] sm:$0xff]
    %v253 = vld [vmem:[#allocation5 + $0x480] sm:$0xff]
    %v254 = vld [vmem:[#allocation5 + $0x488] sm:$0xff]
    %v255 = vld [vmem:[#allocation5 + $0x490] sm:$0xff]
    %v256 = vld [vmem:[#allocation5 + $0x498] sm:$0xff]
    %v257 = vld [vmem:[#allocation5 + $0x4a0] sm:$0xff]
    %v258 = vld [vmem:[#allocation5 + $0x4a8] sm:$0xff]
    %v259 = vld [vmem:[#allocation5 + $0x4b0] sm:$0xff]
    %v260 = vld [vmem:[#allocation5 + $0x4b8] sm:$0xff]
    %v261 = vld [vmem:[#allocation5 + $0x4c0] sm:$0xff]
    %v262 = vld [vmem:[#allocation5 + $0x4c8] sm:$0xff]
    %v263 = vld [vmem:[#allocation5 + $0x4d0] sm:$0xff]
    %v264 = vld [vmem:[#allocation5 + $0x4d8] sm:$0xff]
    %v265 = vld [vmem:[#allocation5 + $0x4e0] sm:$0xff]
    %v266 = vld [vmem:[#allocation5 + $0x4e8] sm:$0xff]
    %v267 = vld [vmem:[#allocation5 + $0x4f0] sm:$0xff]
    %v268 = vld [vmem:[#allocation5 + $0x4f8] sm:$0xff]
    %v269 = vld [vmem:[#allocation5 + $0x500] sm:$0xff]
    %v270 = vld [vmem:[#allocation5 + $0x508] sm:$0xff]
    %v271 = vld [vmem:[#allocation5 + $0x510] sm:$0xff]
    %v272 = vld [vmem:[#allocation5 + $0x518] sm:$0xff]
    %v273 = vld [vmem:[#allocation5 + $0x520] sm:$0xff]
    %v274 = vld [vmem:[#allocation5 + $0x528] sm:$0xff]
    %v275 = vld [vmem:[#allocation5 + $0x530] sm:$0xff]
    %v276 = vld [vmem:[#allocation5 + $0x538] sm:$0xff]
    %v277 = vld [vmem:[#allocation5 + $0x540] sm:$0xff]
    %v278 = vld [vmem:[#allocation5 + $0x548] sm:$0xff]
    %v279 = vld [vmem:[#allocation5 + $0x550] sm:$0xff]
    %v280 = vld [vmem:[#allocation5 + $0x558] sm:$0xff]
    %v281 = vld [vmem:[#allocation5 + $0x560] sm:$0xff]
    %v282 = vld [vmem:[#allocation5 + $0x568] sm:$0xff]
    %v283 = vld [vmem:[#allocation5 + $0x570] sm:$0xff]
    %v284 = vld [vmem:[#allocation5 + $0x578] sm:$0xff]
    %v285 = vld [vmem:[#allocation5 + $0x580] sm:$0xff]
    %v286 = vld [vmem:[#allocation5 + $0x588] sm:$0xff]
    %v287 = vld [vmem:[#allocation5 + $0x590] sm:$0xff]
    %v288 = vld [vmem:[#allocation5 + $0x598] sm:$0xff]
    %v289 = vld [vmem:[#allocation5 + $0x5a0] sm:$0xff]
    %v290 = vld [vmem:[#allocation5 + $0x5a8] sm:$0xff]
    %v291 = vld [vmem:[#allocation5 + $0x5b0] sm:$0xff]
    %v292 = vld [vmem:[#allocation5 + $0x5b8] sm:$0xff]
    %v293 = vld [vmem:[#allocation5 + $0x5c0] sm:$0xff]
    %v294 = vld [vmem:[#allocation5 + $0x5c8] sm:$0xff]
    %v295 = vld [vmem:[#allocation5 + $0x5d0] sm:$0xff]
    %v296 = vld [vmem:[#allocation5 + $0x5d8] sm:$0xff]
    %v297 = vld [vmem:[#allocation5 + $0x5e0] sm:$0xff]
    %v298 = vld [vmem:[#allocation5 + $0x5e8] sm:$0xff]
    %v299 = vld [vmem:[#allocation5 + $0x5f0] sm:$0xff]
    %v300 = vld [vmem:[#allocation5 + $0x5f8] sm:$0xff]
    %v301 = vld [vmem:[#allocation7] sm:$0xff]
    %v303 = vlaneseq
    %v304 = vshrl.u32 %v303, 7
    %v305 = vsub.s32 0, %v304
    %v306 = vrot.slane %v301, %v305
    %v307 = vlaneseq
    %v308 = vshrl.u32 %v307, 7
    %v309 = vsub.s32 1, %v308
    %v310 = vrot.slane %v301, %v309
    %v311 = vlaneseq
    %v312 = vshrl.u32 %v311, 7
    %v313 = vsub.s32 2, %v312
    %v314 = vrot.slane %v301, %v313
    %v315 = vlaneseq
    %v316 = vshrl.u32 %v315, 7
    %v317 = vsub.s32 3, %v316
    %v318 = vrot.slane %v301, %v317
    %v319 = vlaneseq
    %v320 = vshrl.u32 %v319, 7
    %v321 = vsub.s32 4, %v320
    %v322 = vrot.slane %v301, %v321
    %v323 = vlaneseq
    %v324 = vshrl.u32 %v323, 7
    %v325 = vsub.s32 5, %v324
    %v326 = vrot.slane %v301, %v325
    %v327 = vlaneseq
    %v328 = vshrl.u32 %v327, 7
    %v329 = vsub.s32 6, %v328
    %v330 = vrot.slane %v301, %v329
    %v331 = vlaneseq
    %v332 = vshrl.u32 %v331, 7
    %v333 = vsub.s32 7, %v332
    %v334 = vrot.slane %v301, %v333
    %v535 = vunpack.c.l.b16 %v109
    %v536 = vunpack.c.h.b16 %v109
    %v537 = vunpack.c.l.b16 %v110
    %v538 = vunpack.c.h.b16 %v110
    %v539 = vunpack.c.l.b16 %v111
    %v540 = vunpack.c.h.b16 %v111
    %v541 = vunpack.c.l.b16 %v112
    %v542 = vunpack.c.h.b16 %v112
    %v543 = vunpack.c.l.b16 %v113
    %v544 = vunpack.c.h.b16 %v113
    %v545 = vunpack.c.l.b16 %v114
    %v546 = vunpack.c.h.b16 %v114
    %v547 = vunpack.c.l.b16 %v115
    %v548 = vunpack.c.h.b16 %v115
    %v549 = vunpack.c.l.b16 %v116
    %v550 = vunpack.c.h.b16 %v116
    %v551 = vunpack.c.l.b16 %v117
    %v552 = vunpack.c.h.b16 %v117
    %v553 = vunpack.c.l.b16 %v118
    %v554 = vunpack.c.h.b16 %v118
    %v555 = vunpack.c.l.b16 %v119
    %v556 = vunpack.c.h.b16 %v119
    %v557 = vunpack.c.l.b16 %v120
    %v558 = vunpack.c.h.b16 %v120
    %v559 = vunpack.c.l.b16 %v121
    %v560 = vunpack.c.h.b16 %v121
    %v561 = vunpack.c.l.b16 %v122
    %v562 = vunpack.c.h.b16 %v122
    %v563 = vunpack.c.l.b16 %v123
    %v564 = vunpack.c.h.b16 %v123
    %v565 = vunpack.c.l.b16 %v124
    %v566 = vunpack.c.h.b16 %v124
    %v567 = vunpack.c.l.b16 %v125
    %v568 = vunpack.c.h.b16 %v125
    %v569 = vunpack.c.l.b16 %v126
    %v570 = vunpack.c.h.b16 %v126
    %v571 = vunpack.c.l.b16 %v127
    %v572 = vunpack.c.h.b16 %v127
    %v573 = vunpack.c.l.b16 %v128
    %v574 = vunpack.c.h.b16 %v128
    %v575 = vunpack.c.l.b16 %v129
    %v576 = vunpack.c.h.b16 %v129
    %v577 = vunpack.c.l.b16 %v130
    %v578 = vunpack.c.h.b16 %v130
    %v579 = vunpack.c.l.b16 %v131
    %v580 = vunpack.c.h.b16 %v131
    %v581 = vunpack.c.l.b16 %v132
    %v582 = vunpack.c.h.b16 %v132
    %v583 = vunpack.c.l.b16 %v133
    %v584 = vunpack.c.h.b16 %v133
    %v585 = vunpack.c.l.b16 %v134
    %v586 = vunpack.c.h.b16 %v134
    %v587 = vunpack.c.l.b16 %v135
    %v588 = vunpack.c.h.b16 %v135
    %v589 = vunpack.c.l.b16 %v136
    %v590 = vunpack.c.h.b16 %v136
    %v591 = vunpack.c.l.b16 %v137
    %v592 = vunpack.c.h.b16 %v137
    %v593 = vunpack.c.l.b16 %v138
    %v594 = vunpack.c.h.b16 %v138
    %v595 = vunpack.c.l.b16 %v139
    %v596 = vunpack.c.h.b16 %v139
    %v597 = vunpack.c.l.b16 %v140
    %v598 = vunpack.c.h.b16 %v140
    %v599 = vunpack.c.l.b16 %v141
    %v600 = vunpack.c.h.b16 %v141
    %v601 = vunpack.c.l.b16 %v142
    %v602 = vunpack.c.h.b16 %v142
    %v603 = vunpack.c.l.b16 %v143
    %v604 = vunpack.c.h.b16 %v143
    %v605 = vunpack.c.l.b16 %v144
    %v606 = vunpack.c.h.b16 %v144
    %v607 = vunpack.c.l.b16 %v145
    %v608 = vunpack.c.h.b16 %v145
    %v609 = vunpack.c.l.b16 %v146
    %v610 = vunpack.c.h.b16 %v146
    %v611 = vunpack.c.l.b16 %v147
    %v612 = vunpack.c.h.b16 %v147
    %v613 = vunpack.c.l.b16 %v148
    %v614 = vunpack.c.h.b16 %v148
    %v615 = vunpack.c.l.b16 %v149
    %v616 = vunpack.c.h.b16 %v149
    %v617 = vunpack.c.l.b16 %v150
    %v618 = vunpack.c.h.b16 %v150
    %v619 = vunpack.c.l.b16 %v151
    %v620 = vunpack.c.h.b16 %v151
    %v621 = vunpack.c.l.b16 %v152
    %v622 = vunpack.c.h.b16 %v152
    %v623 = vunpack.c.l.b16 %v153
    %v624 = vunpack.c.h.b16 %v153
    %v625 = vunpack.c.l.b16 %v154
    %v626 = vunpack.c.h.b16 %v154
    %v627 = vunpack.c.l.b16 %v155
    %v628 = vunpack.c.h.b16 %v155
    %v629 = vunpack.c.l.b16 %v156
    %v630 = vunpack.c.h.b16 %v156
    %v631 = vunpack.c.l.b16 %v157
    %v632 = vunpack.c.h.b16 %v157
    %v633 = vunpack.c.l.b16 %v158
    %v634 = vunpack.c.h.b16 %v158
    %v635 = vunpack.c.l.b16 %v159
    %v636 = vunpack.c.h.b16 %v159
    %v637 = vunpack.c.l.b16 %v160
    %v638 = vunpack.c.h.b16 %v160
    %v639 = vunpack.c.l.b16 %v161
    %v640 = vunpack.c.h.b16 %v161
    %v641 = vunpack.c.l.b16 %v162
    %v642 = vunpack.c.h.b16 %v162
    %v643 = vunpack.c.l.b16 %v163
    %v644 = vunpack.c.h.b16 %v163
    %v645 = vunpack.c.l.b16 %v164
    %v646 = vunpack.c.h.b16 %v164
    %v647 = vunpack.c.l.b16 %v165
    %v648 = vunpack.c.h.b16 %v165
    %v649 = vunpack.c.l.b16 %v166
    %v650 = vunpack.c.h.b16 %v166
    %v651 = vunpack.c.l.b16 %v167
    %v652 = vunpack.c.h.b16 %v167
    %v653 = vunpack.c.l.b16 %v168
    %v654 = vunpack.c.h.b16 %v168
    %v655 = vunpack.c.l.b16 %v169
    %v656 = vunpack.c.h.b16 %v169
    %v657 = vunpack.c.l.b16 %v170
    %v658 = vunpack.c.h.b16 %v170
    %v659 = vunpack.c.l.b16 %v171
    %v660 = vunpack.c.h.b16 %v171
    %v661 = vunpack.c.l.b16 %v172
    %v662 = vunpack.c.h.b16 %v172
    %v663 = vunpack.c.l.b16 %v173
    %v664 = vunpack.c.h.b16 %v173
    %v665 = vunpack.c.l.b16 %v174
    %v666 = vunpack.c.h.b16 %v174
    %v667 = vunpack.c.l.b16 %v175
    %v668 = vunpack.c.h.b16 %v175
    %v669 = vunpack.c.l.b16 %v176
    %v670 = vunpack.c.h.b16 %v176
    %v671 = vunpack.c.l.b16 %v177
    %v672 = vunpack.c.h.b16 %v177
    %v673 = vunpack.c.l.b16 %v178
    %v674 = vunpack.c.h.b16 %v178
    %v675 = vunpack.c.l.b16 %v179
    %v676 = vunpack.c.h.b16 %v179
    %v677 = vunpack.c.l.b16 %v180
    %v678 = vunpack.c.h.b16 %v180
    %v679 = vunpack.c.l.b16 %v181
    %v680 = vunpack.c.h.b16 %v181
    %v681 = vunpack.c.l.b16 %v182
    %v682 = vunpack.c.h.b16 %v182
    %v683 = vunpack.c.l.b16 %v183
    %v684 = vunpack.c.h.b16 %v183
    %v685 = vunpack.c.l.b16 %v184
    %v686 = vunpack.c.h.b16 %v184
    %v687 = vunpack.c.l.b16 %v185
    %v688 = vunpack.c.h.b16 %v185
    %v689 = vunpack.c.l.b16 %v186
    %v690 = vunpack.c.h.b16 %v186
    %v691 = vunpack.c.l.b16 %v187
    %v692 = vunpack.c.h.b16 %v187
    %v693 = vunpack.c.l.b16 %v188
    %v694 = vunpack.c.h.b16 %v188
    %v695 = vunpack.c.l.b16 %v189
    %v696 = vunpack.c.h.b16 %v189
    %v697 = vunpack.c.l.b16 %v190
    %v698 = vunpack.c.h.b16 %v190
    %v699 = vunpack.c.l.b16 %v191
    %v700 = vunpack.c.h.b16 %v191
    %v701 = vunpack.c.l.b16 %v192
    %v702 = vunpack.c.h.b16 %v192
    %v703 = vunpack.c.l.b16 %v193
    %v704 = vunpack.c.h.b16 %v193
    %v705 = vunpack.c.l.b16 %v194
    %v706 = vunpack.c.h.b16 %v194
    %v707 = vunpack.c.l.b16 %v195
    %v708 = vunpack.c.h.b16 %v195
    %v709 = vunpack.c.l.b16 %v196
    %v710 = vunpack.c.h.b16 %v196
    %v711 = vunpack.c.l.b16 %v197
    %v712 = vunpack.c.h.b16 %v197
    %v713 = vunpack.c.l.b16 %v198
    %v714 = vunpack.c.h.b16 %v198
    %v715 = vunpack.c.l.b16 %v199
    %v716 = vunpack.c.h.b16 %v199
    %v717 = vunpack.c.l.b16 %v200
    %v718 = vunpack.c.h.b16 %v200
    %v719 = vunpack.c.l.b16 %v201
    %v720 = vunpack.c.h.b16 %v201
    %v721 = vunpack.c.l.b16 %v202
    %v722 = vunpack.c.h.b16 %v202
    %v723 = vunpack.c.l.b16 %v203
    %v724 = vunpack.c.h.b16 %v203
    %v725 = vunpack.c.l.b16 %v204
    %v726 = vunpack.c.h.b16 %v204
    %v727 = vunpack.c.l.b16 %v205
    %v728 = vunpack.c.h.b16 %v205
    %v729 = vunpack.c.l.b16 %v206
    %v730 = vunpack.c.h.b16 %v206
    %v731 = vunpack.c.l.b16 %v207
    %v732 = vunpack.c.h.b16 %v207
    %v733 = vunpack.c.l.b16 %v208
    %v734 = vunpack.c.h.b16 %v208
    %v735 = vunpack.c.l.b16 %v209
    %v736 = vunpack.c.h.b16 %v209
    %v737 = vunpack.c.l.b16 %v210
    %v738 = vunpack.c.h.b16 %v210
    %v739 = vunpack.c.l.b16 %v211
    %v740 = vunpack.c.h.b16 %v211
    %v741 = vunpack.c.l.b16 %v212
    %v742 = vunpack.c.h.b16 %v212
    %v743 = vunpack.c.l.b16 %v213
    %v744 = vunpack.c.h.b16 %v213
    %v745 = vunpack.c.l.b16 %v214
    %v746 = vunpack.c.h.b16 %v214
    %v747 = vunpack.c.l.b16 %v215
    %v748 = vunpack.c.h.b16 %v215
    %v749 = vunpack.c.l.b16 %v216
    %v750 = vunpack.c.h.b16 %v216
    %v751 = vunpack.c.l.b16 %v217
    %v752 = vunpack.c.h.b16 %v217
    %v753 = vunpack.c.l.b16 %v218
    %v754 = vunpack.c.h.b16 %v218
    %v755 = vunpack.c.l.b16 %v219
    %v756 = vunpack.c.h.b16 %v219
    %v757 = vunpack.c.l.b16 %v220
    %v758 = vunpack.c.h.b16 %v220
    %v759 = vunpack.c.l.b16 %v221
    %v760 = vunpack.c.h.b16 %v221
    %v761 = vunpack.c.l.b16 %v222
    %v762 = vunpack.c.h.b16 %v222
    %v763 = vunpack.c.l.b16 %v223
    %v764 = vunpack.c.h.b16 %v223
    %v765 = vunpack.c.l.b16 %v224
    %v766 = vunpack.c.h.b16 %v224
    %v767 = vunpack.c.l.b16 %v225
    %v768 = vunpack.c.h.b16 %v225
    %v769 = vunpack.c.l.b16 %v226
    %v770 = vunpack.c.h.b16 %v226
    %v771 = vunpack.c.l.b16 %v227
    %v772 = vunpack.c.h.b16 %v227
    %v773 = vunpack.c.l.b16 %v228
    %v774 = vunpack.c.h.b16 %v228
    %v775 = vunpack.c.l.b16 %v229
    %v776 = vunpack.c.h.b16 %v229
    %v777 = vunpack.c.l.b16 %v230
    %v778 = vunpack.c.h.b16 %v230
    %v779 = vunpack.c.l.b16 %v231
    %v780 = vunpack.c.h.b16 %v231
    %v781 = vunpack.c.l.b16 %v232
    %v782 = vunpack.c.h.b16 %v232
    %v783 = vunpack.c.l.b16 %v233
    %v784 = vunpack.c.h.b16 %v233
    %v785 = vunpack.c.l.b16 %v234
    %v786 = vunpack.c.h.b16 %v234
    %v787 = vunpack.c.l.b16 %v235
    %v788 = vunpack.c.h.b16 %v235
    %v789 = vunpack.c.l.b16 %v236
    %v790 = vunpack.c.h.b16 %v236
    %v791 = vunpack.c.l.b16 %v237
    %v792 = vunpack.c.h.b16 %v237
    %v793 = vunpack.c.l.b16 %v238
    %v794 = vunpack.c.h.b16 %v238
    %v795 = vunpack.c.l.b16 %v239
    %v796 = vunpack.c.h.b16 %v239
    %v797 = vunpack.c.l.b16 %v240
    %v798 = vunpack.c.h.b16 %v240
    %v799 = vunpack.c.l.b16 %v241
    %v800 = vunpack.c.h.b16 %v241
    %v801 = vunpack.c.l.b16 %v242
    %v802 = vunpack.c.h.b16 %v242
    %v803 = vunpack.c.l.b16 %v243
    %v804 = vunpack.c.h.b16 %v243
    %v805 = vunpack.c.l.b16 %v244
    %v806 = vunpack.c.h.b16 %v244
    %v807 = vunpack.c.l.b16 %v245
    %v808 = vunpack.c.h.b16 %v245
    %v809 = vunpack.c.l.b16 %v246
    %v810 = vunpack.c.h.b16 %v246
    %v811 = vunpack.c.l.b16 %v247
    %v812 = vunpack.c.h.b16 %v247
    %v813 = vunpack.c.l.b16 %v248
    %v814 = vunpack.c.h.b16 %v248
    %v815 = vunpack.c.l.b16 %v249
    %v816 = vunpack.c.h.b16 %v249
    %v817 = vunpack.c.l.b16 %v250
    %v818 = vunpack.c.h.b16 %v250
    %v819 = vunpack.c.l.b16 %v251
    %v820 = vunpack.c.h.b16 %v251
    %v821 = vunpack.c.l.b16 %v252
    %v822 = vunpack.c.h.b16 %v252
    %v823 = vunpack.c.l.b16 %v253
    %v824 = vunpack.c.h.b16 %v253
    %v825 = vunpack.c.l.b16 %v254
    %v826 = vunpack.c.h.b16 %v254
    %v827 = vunpack.c.l.b16 %v255
    %v828 = vunpack.c.h.b16 %v255
    %v829 = vunpack.c.l.b16 %v256
    %v830 = vunpack.c.h.b16 %v256
    %v831 = vunpack.c.l.b16 %v257
    %v832 = vunpack.c.h.b16 %v257
    %v833 = vunpack.c.l.b16 %v258
    %v834 = vunpack.c.h.b16 %v258
    %v835 = vunpack.c.l.b16 %v259
    %v836 = vunpack.c.h.b16 %v259
    %v837 = vunpack.c.l.b16 %v260
    %v838 = vunpack.c.h.b16 %v260
    %v839 = vunpack.c.l.b16 %v261
    %v840 = vunpack.c.h.b16 %v261
    %v841 = vunpack.c.l.b16 %v262
    %v842 = vunpack.c.h.b16 %v262
    %v843 = vunpack.c.l.b16 %v263
    %v844 = vunpack.c.h.b16 %v263
    %v845 = vunpack.c.l.b16 %v264
    %v846 = vunpack.c.h.b16 %v264
    %v847 = vunpack.c.l.b16 %v265
    %v848 = vunpack.c.h.b16 %v265
    %v849 = vunpack.c.l.b16 %v266
    %v850 = vunpack.c.h.b16 %v266
    %v851 = vunpack.c.l.b16 %v267
    %v852 = vunpack.c.h.b16 %v267
    %v853 = vunpack.c.l.b16 %v268
    %v854 = vunpack.c.h.b16 %v268
    %v855 = vunpack.c.l.b16 %v269
    %v856 = vunpack.c.h.b16 %v269
    %v857 = vunpack.c.l.b16 %v270
    %v858 = vunpack.c.h.b16 %v270
    %v859 = vunpack.c.l.b16 %v271
    %v860 = vunpack.c.h.b16 %v271
    %v861 = vunpack.c.l.b16 %v272
    %v862 = vunpack.c.h.b16 %v272
    %v863 = vunpack.c.l.b16 %v273
    %v864 = vunpack.c.h.b16 %v273
    %v865 = vunpack.c.l.b16 %v274
    %v866 = vunpack.c.h.b16 %v274
    %v867 = vunpack.c.l.b16 %v275
    %v868 = vunpack.c.h.b16 %v275
    %v869 = vunpack.c.l.b16 %v276
    %v870 = vunpack.c.h.b16 %v276
    %v871 = vunpack.c.l.b16 %v277
    %v872 = vunpack.c.h.b16 %v277
    %v873 = vunpack.c.l.b16 %v278
    %v874 = vunpack.c.h.b16 %v278
    %v875 = vunpack.c.l.b16 %v279
    %v876 = vunpack.c.h.b16 %v279
    %v877 = vunpack.c.l.b16 %v280
    %v878 = vunpack.c.h.b16 %v280
    %v879 = vunpack.c.l.b16 %v281
    %v880 = vunpack.c.h.b16 %v281
    %v881 = vunpack.c.l.b16 %v282
    %v882 = vunpack.c.h.b16 %v282
    %v883 = vunpack.c.l.b16 %v283
    %v884 = vunpack.c.h.b16 %v283
    %v885 = vunpack.c.l.b16 %v284
    %v886 = vunpack.c.h.b16 %v284
    %v887 = vunpack.c.l.b16 %v285
    %v888 = vunpack.c.h.b16 %v285
    %v889 = vunpack.c.l.b16 %v286
    %v890 = vunpack.c.h.b16 %v286
    %v891 = vunpack.c.l.b16 %v287
    %v892 = vunpack.c.h.b16 %v287
    %v893 = vunpack.c.l.b16 %v288
    %v894 = vunpack.c.h.b16 %v288
    %v895 = vunpack.c.l.b16 %v289
    %v896 = vunpack.c.h.b16 %v289
    %v897 = vunpack.c.l.b16 %v290
    %v898 = vunpack.c.h.b16 %v290
    %v899 = vunpack.c.l.b16 %v291
    %v900 = vunpack.c.h.b16 %v291
    %v901 = vunpack.c.l.b16 %v292
    %v902 = vunpack.c.h.b16 %v292
    %v903 = vunpack.c.l.b16 %v293
    %v904 = vunpack.c.h.b16 %v293
    %v905 = vunpack.c.l.b16 %v294
    %v906 = vunpack.c.h.b16 %v294
    %v907 = vunpack.c.l.b16 %v295
    %v908 = vunpack.c.h.b16 %v295
    %v909 = vunpack.c.l.b16 %v296
    %v910 = vunpack.c.h.b16 %v296
    %v911 = vunpack.c.l.b16 %v297
    %v912 = vunpack.c.h.b16 %v297
    %v913 = vunpack.c.l.b16 %v298
    %v914 = vunpack.c.h.b16 %v298
    %v915 = vunpack.c.l.b16 %v299
    %v916 = vunpack.c.h.b16 %v299
    %v917 = vunpack.c.l.b16 %v300
    %v918 = vunpack.c.h.b16 %v300
    %v919 = vpack.c.b16 %v543, %v535
    %v920 = vpack.c.b16 %v544, %v536
    %v921 = vpack.c.b16 %v545, %v537
    %v922 = vpack.c.b16 %v546, %v538
    %v923 = vpack.c.b16 %v547, %v539
    %v924 = vpack.c.b16 %v548, %v540
    %v925 = vpack.c.b16 %v549, %v541
    %v926 = vpack.c.b16 %v550, %v542
    %v927 = vpack.c.b16 %v559, %v551
    %v928 = vpack.c.b16 %v560, %v552
    %v929 = vpack.c.b16 %v561, %v553
    %v930 = vpack.c.b16 %v562, %v554
    %v931 = vpack.c.b16 %v563, %v555
    %v932 = vpack.c.b16 %v564, %v556
    %v933 = vpack.c.b16 %v565, %v557
    %v934 = vpack.c.b16 %v566, %v558
    %v935 = vpack.c.b16 %v575, %v567
    %v936 = vpack.c.b16 %v576, %v568
    %v937 = vpack.c.b16 %v577, %v569
    %v938 = vpack.c.b16 %v578, %v570
    %v939 = vpack.c.b16 %v579, %v571
    %v940 = vpack.c.b16 %v580, %v572
    %v941 = vpack.c.b16 %v581, %v573
    %v942 = vpack.c.b16 %v582, %v574
    %v943 = vpack.c.b16 %v591, %v583
    %v944 = vpack.c.b16 %v592, %v584
    %v945 = vpack.c.b16 %v593, %v585
    %v946 = vpack.c.b16 %v594, %v586
    %v947 = vpack.c.b16 %v595, %v587
    %v948 = vpack.c.b16 %v596, %v588
    %v949 = vpack.c.b16 %v597, %v589
    %v950 = vpack.c.b16 %v598, %v590
    %v951 = vpack.c.b16 %v607, %v599
    %v952 = vpack.c.b16 %v608, %v600
    %v953 = vpack.c.b16 %v609, %v601
    %v954 = vpack.c.b16 %v610, %v602
    %v955 = vpack.c.b16 %v611, %v603
    %v956 = vpack.c.b16 %v612, %v604
    %v957 = vpack.c.b16 %v613, %v605
    %v958 = vpack.c.b16 %v614, %v606
    %v959 = vpack.c.b16 %v623, %v615
    %v960 = vpack.c.b16 %v624, %v616
    %v961 = vpack.c.b16 %v625, %v617
    %v962 = vpack.c.b16 %v626, %v618
    %v963 = vpack.c.b16 %v627, %v619
    %v964 = vpack.c.b16 %v628, %v620
    %v965 = vpack.c.b16 %v629, %v621
    %v966 = vpack.c.b16 %v630, %v622
    %v967 = vpack.c.b16 %v639, %v631
    %v968 = vpack.c.b16 %v640, %v632
    %v969 = vpack.c.b16 %v641, %v633
    %v970 = vpack.c.b16 %v642, %v634
    %v971 = vpack.c.b16 %v643, %v635
    %v972 = vpack.c.b16 %v644, %v636
    %v973 = vpack.c.b16 %v645, %v637
    %v974 = vpack.c.b16 %v646, %v638
    %v975 = vpack.c.b16 %v655, %v647
    %v976 = vpack.c.b16 %v656, %v648
    %v977 = vpack.c.b16 %v657, %v649
    %v978 = vpack.c.b16 %v658, %v650
    %v979 = vpack.c.b16 %v659, %v651
    %v980 = vpack.c.b16 %v660, %v652
    %v981 = vpack.c.b16 %v661, %v653
    %v982 = vpack.c.b16 %v662, %v654
    %v983 = vpack.c.b16 %v671, %v663
    %v984 = vpack.c.b16 %v672, %v664
    %v985 = vpack.c.b16 %v673, %v665
    %v986 = vpack.c.b16 %v674, %v666
    %v987 = vpack.c.b16 %v675, %v667
    %v988 = vpack.c.b16 %v676, %v668
    %v989 = vpack.c.b16 %v677, %v669
    %v990 = vpack.c.b16 %v678, %v670
    %v991 = vpack.c.b16 %v687, %v679
    %v992 = vpack.c.b16 %v688, %v680
    %v993 = vpack.c.b16 %v689, %v681
    %v994 = vpack.c.b16 %v690, %v682
    %v995 = vpack.c.b16 %v691, %v683
    %v996 = vpack.c.b16 %v692, %v684
    %v997 = vpack.c.b16 %v693, %v685
    %v998 = vpack.c.b16 %v694, %v686
    %v999 = vpack.c.b16 %v703, %v695
    %v1000 = vpack.c.b16 %v704, %v696
    %v1001 = vpack.c.b16 %v705, %v697
    %v1002 = vpack.c.b16 %v706, %v698
    %v1003 = vpack.c.b16 %v707, %v699
    %v1004 = vpack.c.b16 %v708, %v700
    %v1005 = vpack.c.b16 %v709, %v701
    %v1006 = vpack.c.b16 %v710, %v702
    %v1007 = vpack.c.b16 %v719, %v711
    %v1008 = vpack.c.b16 %v720, %v712
    %v1009 = vpack.c.b16 %v721, %v713
    %v1010 = vpack.c.b16 %v722, %v714
    %v1011 = vpack.c.b16 %v723, %v715
    %v1012 = vpack.c.b16 %v724, %v716
    %v1013 = vpack.c.b16 %v725, %v717
    %v1014 = vpack.c.b16 %v726, %v718
    %v1015 = vpack.c.b16 %v735, %v727
    %v1016 = vpack.c.b16 %v736, %v728
    %v1017 = vpack.c.b16 %v737, %v729
    %v1018 = vpack.c.b16 %v738, %v730
    %v1019 = vpack.c.b16 %v739, %v731
    %v1020 = vpack.c.b16 %v740, %v732
    %v1021 = vpack.c.b16 %v741, %v733
    %v1022 = vpack.c.b16 %v742, %v734
    %v1023 = vpack.c.b16 %v751, %v743
    %v1024 = vpack.c.b16 %v752, %v744
    %v1025 = vpack.c.b16 %v753, %v745
    %v1026 = vpack.c.b16 %v754, %v746
    %v1027 = vpack.c.b16 %v755, %v747
    %v1028 = vpack.c.b16 %v756, %v748
    %v1029 = vpack.c.b16 %v757, %v749
    %v1030 = vpack.c.b16 %v758, %v750
    %v1031 = vpack.c.b16 %v767, %v759
    %v1032 = vpack.c.b16 %v768, %v760
    %v1033 = vpack.c.b16 %v769, %v761
    %v1034 = vpack.c.b16 %v770, %v762
    %v1035 = vpack.c.b16 %v771, %v763
    %v1036 = vpack.c.b16 %v772, %v764
    %v1037 = vpack.c.b16 %v773, %v765
    %v1038 = vpack.c.b16 %v774, %v766
    %v1039 = vpack.c.b16 %v783, %v775
    %v1040 = vpack.c.b16 %v784, %v776
    %v1041 = vpack.c.b16 %v785, %v777
    %v1042 = vpack.c.b16 %v786, %v778
    %v1043 = vpack.c.b16 %v787, %v779
    %v1044 = vpack.c.b16 %v788, %v780
    %v1045 = vpack.c.b16 %v789, %v781
    %v1046 = vpack.c.b16 %v790, %v782
    %v1047 = vpack.c.b16 %v799, %v791
    %v1048 = vpack.c.b16 %v800, %v792
    %v1049 = vpack.c.b16 %v801, %v793
    %v1050 = vpack.c.b16 %v802, %v794
    %v1051 = vpack.c.b16 %v803, %v795
    %v1052 = vpack.c.b16 %v804, %v796
    %v1053 = vpack.c.b16 %v805, %v797
    %v1054 = vpack.c.b16 %v806, %v798
    %v1055 = vpack.c.b16 %v815, %v807
    %v1056 = vpack.c.b16 %v816, %v808
    %v1057 = vpack.c.b16 %v817, %v809
    %v1058 = vpack.c.b16 %v818, %v810
    %v1059 = vpack.c.b16 %v819, %v811
    %v1060 = vpack.c.b16 %v820, %v812
    %v1061 = vpack.c.b16 %v821, %v813
    %v1062 = vpack.c.b16 %v822, %v814
    %v1063 = vpack.c.b16 %v831, %v823
    %v1064 = vpack.c.b16 %v832, %v824
    %v1065 = vpack.c.b16 %v833, %v825
    %v1066 = vpack.c.b16 %v834, %v826
    %v1067 = vpack.c.b16 %v835, %v827
    %v1068 = vpack.c.b16 %v836, %v828
    %v1069 = vpack.c.b16 %v837, %v829
    %v1070 = vpack.c.b16 %v838, %v830
    %v1071 = vpack.c.b16 %v847, %v839
    %v1072 = vpack.c.b16 %v848, %v840
    %v1073 = vpack.c.b16 %v849, %v841
    %v1074 = vpack.c.b16 %v850, %v842
    %v1075 = vpack.c.b16 %v851, %v843
    %v1076 = vpack.c.b16 %v852, %v844
    %v1077 = vpack.c.b16 %v853, %v845
    %v1078 = vpack.c.b16 %v854, %v846
    %v1079 = vpack.c.b16 %v863, %v855
    %v1080 = vpack.c.b16 %v864, %v856
    %v1081 = vpack.c.b16 %v865, %v857
    %v1082 = vpack.c.b16 %v866, %v858
    %v1083 = vpack.c.b16 %v867, %v859
    %v1084 = vpack.c.b16 %v868, %v860
    %v1085 = vpack.c.b16 %v869, %v861
    %v1086 = vpack.c.b16 %v870, %v862
    %v1087 = vpack.c.b16 %v879, %v871
    %v1088 = vpack.c.b16 %v880, %v872
    %v1089 = vpack.c.b16 %v881, %v873
    %v1090 = vpack.c.b16 %v882, %v874
    %v1091 = vpack.c.b16 %v883, %v875
    %v1092 = vpack.c.b16 %v884, %v876
    %v1093 = vpack.c.b16 %v885, %v877
    %v1094 = vpack.c.b16 %v886, %v878
    %v1095 = vpack.c.b16 %v895, %v887
    %v1096 = vpack.c.b16 %v896, %v888
    %v1097 = vpack.c.b16 %v897, %v889
    %v1098 = vpack.c.b16 %v898, %v890
    %v1099 = vpack.c.b16 %v899, %v891
    %v1100 = vpack.c.b16 %v900, %v892
    %v1101 = vpack.c.b16 %v901, %v893
    %v1102 = vpack.c.b16 %v902, %v894
    %v1103 = vpack.c.b16 %v911, %v903
    %v1104 = vpack.c.b16 %v912, %v904
    %v1105 = vpack.c.b16 %v913, %v905
    %v1106 = vpack.c.b16 %v914, %v906
    %v1107 = vpack.c.b16 %v915, %v907
    %v1108 = vpack.c.b16 %v916, %v908
    %v1109 = vpack.c.b16 %v917, %v909
    %v1110 = vpack.c.b16 %v918, %v910
    %1303 = vmatprep.subr.bf16.mxu0 %v976
    %1304 = vmatpush1.bf16.msra.mxu0 %v975
    %1305 = vmatprep.subr.bf16.mxu0 %v968
    %1306 = vmatpush1.bf16.msra.mxu0 %v967
    %1307 = vmatprep.subr.bf16.mxu0 %v960
    %1308 = vmatpush1.bf16.msra.mxu0 %v959
    %1309 = vmatprep.subr.bf16.mxu0 %v952
    %1310 = vmatpush1.bf16.msra.mxu0 %v951
    %1311 = vmatprep.subr.bf16.mxu0 %v944
    %1312 = vmatpush1.bf16.msra.mxu0 %v943
    %1313 = vmatprep.subr.bf16.mxu0 %v936
    %1314 = vmatpush1.bf16.msra.mxu0 %v935
    %1315 = vmatprep.subr.bf16.mxu0 %v928
    %1316 = vmatpush1.bf16.msra.mxu0 %v927
    %1317 = vmatprep.subr.bf16.mxu0 %v920
    %1318 = vmatpush1.bf16.msra.mxu0 %v919
    %1319 = vmatprep.subr.bf16.mxu0 %v1040
    %1320 = vmatpush2.bf16.msra.mxu0 %v1039
    %1321 = vmatprep.subr.bf16.mxu0 %v1032
    %1322 = vmatpush2.bf16.msra.mxu0 %v1031
    %1323 = vmatprep.subr.bf16.mxu0 %v1024
    %1324 = vmatpush2.bf16.msra.mxu0 %v1023
    %1325 = vmatprep.subr.bf16.mxu0 %v1016
    %1326 = vmatpush2.bf16.msra.mxu0 %v1015
    %1327 = vmatprep.subr.bf16.mxu0 %v1008
    %1328 = vmatpush2.bf16.msra.mxu0 %v1007
    %1329 = vmatprep.subr.bf16.mxu0 %v1000
    %1330 = vmatpush2.bf16.msra.mxu0 %v999
    %1331 = vmatprep.subr.bf16.mxu0 %v992
    %1332 = vmatpush2.bf16.msra.mxu0 %v991
    %1333 = vmatprep.subr.bf16.mxu0 %v984
    %1334 = vmatpush2.bf16.msra.mxu0 %v983
    %1335 = vmatprep.mubr.bf16.mxu0 %v107
    %1336 = vmatmul.mubr.bf16.gmra.mxu0 %v106
    %v1337 = vpop.f32.mrf.mxu0
    %v1338 = vadd.f32 %v306, %v1337
    %v1339 = vpop.f32.mrf.mxu0
    %v1340 = vadd.f32 %v310, %v1339
    %v1341 = vpop.f32.mrf.mxu0
    %v1342 = vadd.f32 %v306, %v1341
    %v1343 = vpop.f32.mrf.mxu0
    %v1344 = vadd.f32 %v310, %v1343
    %1345 = vdwg.mxu0
    %1346 = vmatprep.subr.bf16.mxu0 %v1104
    %1347 = vmatpush1.bf16.msra.mxu0 %v1103
    %1348 = vmatprep.subr.bf16.mxu0 %v1096
    %1349 = vmatpush1.bf16.msra.mxu0 %v1095
    %1350 = vmatprep.subr.bf16.mxu0 %v1088
    %1351 = vmatpush1.bf16.msra.mxu0 %v1087
    %1352 = vmatprep.subr.bf16.mxu0 %v1080
    %1353 = vmatpush1.bf16.msra.mxu0 %v1079
    %1354 = vmatprep.subr.bf16.mxu0 %v1072
    %1355 = vmatpush1.bf16.msra.mxu0 %v1071
    %1356 = vmatprep.subr.bf16.mxu0 %v1064
    %1357 = vmatpush1.bf16.msra.mxu0 %v1063
    %1358 = vmatprep.subr.bf16.mxu0 %v1056
    %1359 = vmatpush1.bf16.msra.mxu0 %v1055
    %1360 = vmatprep.subr.bf16.mxu0 %v1048
    %1361 = vmatpush1.bf16.msra.mxu0 %v1047
    %1362 = vmatprep.subr.bf16.mxu0 0
    %1363 = vmatpush2.bf16.msra.mxu0 0
    %1364 = vmatprep.subr.bf16.mxu0 0
    %1365 = vmatpush2.bf16.msra.mxu0 0
    %1366 = vmatprep.subr.bf16.mxu0 0
    %1367 = vmatpush2.bf16.msra.mxu0 0
    %1368 = vmatprep.subr.bf16.mxu0 0
    %1369 = vmatpush2.bf16.msra.mxu0 0
    %1370 = vmatprep.subr.bf16.mxu0 0
    %1371 = vmatpush2.bf16.msra.mxu0 0
    %1372 = vmatprep.subr.bf16.mxu0 0
    %1373 = vmatpush2.bf16.msra.mxu0 0
    %1374 = vmatprep.subr.bf16.mxu0 0
    %1375 = vmatpush2.bf16.msra.mxu0 0
    %1376 = vmatprep.subr.bf16.mxu0 0
    %1377 = vmatpush2.bf16.msra.mxu0 0
    %1378 = vmatprep.mubr.bf16.mxu0 0
    %1379 = vmatmul.mubr.bf16.gmra.mxu0 %v108
    %v1380 = vpop.f32.mrf.mxu0
    %v1381 = vadd.f32 %v1338, %v1380
    %v1382 = vpop.f32.mrf.mxu0
    %v1383 = vadd.f32 %v1340, %v1382
    %v1384 = vpop.f32.mrf.mxu0
    %v1385 = vadd.f32 %v1342, %v1384
    %v1386 = vpop.f32.mrf.mxu0
    %v1387 = vadd.f32 %v1344, %v1386
    %1388 = vdwg.mxu0
    %1389 = vmatprep.subr.bf16.mxu0 %v978
    %1390 = vmatpush1.bf16.msra.mxu0 %v977
    %1391 = vmatprep.subr.bf16.mxu0 %v970
    %1392 = vmatpush1.bf16.msra.mxu0 %v969
    %1393 = vmatprep.subr.bf16.mxu0 %v962
    %1394 = vmatpush1.bf16.msra.mxu0 %v961
    %1395 = vmatprep.subr.bf16.mxu0 %v954
    %1396 = vmatpush1.bf16.msra.mxu0 %v953
    %1397 = vmatprep.subr.bf16.mxu0 %v946
    %1398 = vmatpush1.bf16.msra.mxu0 %v945
    %1399 = vmatprep.subr.bf16.mxu0 %v938
    %1400 = vmatpush1.bf16.msra.mxu0 %v937
    %1401 = vmatprep.subr.bf16.mxu0 %v930
    %1402 = vmatpush1.bf16.msra.mxu0 %v929
    %1403 = vmatprep.subr.bf16.mxu0 %v922
    %1404 = vmatpush1.bf16.msra.mxu0 %v921
    %1405 = vmatprep.subr.bf16.mxu0 %v1042
    %1406 = vmatpush2.bf16.msra.mxu0 %v1041
    %1407 = vmatprep.subr.bf16.mxu0 %v1034
    %1408 = vmatpush2.bf16.msra.mxu0 %v1033
    %1409 = vmatprep.subr.bf16.mxu0 %v1026
    %1410 = vmatpush2.bf16.msra.mxu0 %v1025
    %1411 = vmatprep.subr.bf16.mxu0 %v1018
    %1412 = vmatpush2.bf16.msra.mxu0 %v1017
    %1413 = vmatprep.subr.bf16.mxu0 %v1010
    %1414 = vmatpush2.bf16.msra.mxu0 %v1009
    %1415 = vmatprep.subr.bf16.mxu0 %v1002
    %1416 = vmatpush2.bf16.msra.mxu0 %v1001
    %1417 = vmatprep.subr.bf16.mxu0 %v994
    %1418 = vmatpush2.bf16.msra.mxu0 %v993
    %1419 = vmatprep.subr.bf16.mxu0 %v986
    %1420 = vmatpush2.bf16.msra.mxu0 %v985
    %1421 = vmatprep.mubr.bf16.mxu0 %v107
    %1422 = vmatmul.mubr.bf16.gmra.mxu0 %v106
    %v1423 = vpop.f32.mrf.mxu0
    %v1424 = vadd.f32 %v314, %v1423
    %v1425 = vpop.f32.mrf.mxu0
    %v1426 = vadd.f32 %v318, %v1425
    %v1427 = vpop.f32.mrf.mxu0
    %v1428 = vadd.f32 %v314, %v1427
    %v1429 = vpop.f32.mrf.mxu0
    %v1430 = vadd.f32 %v318, %v1429
    %1431 = vdwg.mxu0
    %1432 = vmatprep.subr.bf16.mxu0 %v1106
    %1433 = vmatpush1.bf16.msra.mxu0 %v1105
    %1434 = vmatprep.subr.bf16.mxu0 %v1098
    %1435 = vmatpush1.bf16.msra.mxu0 %v1097
    %1436 = vmatprep.subr.bf16.mxu0 %v1090
    %1437 = vmatpush1.bf16.msra.mxu0 %v1089
    %1438 = vmatprep.subr.bf16.mxu0 %v1082
    %1439 = vmatpush1.bf16.msra.mxu0 %v1081
    %1440 = vmatprep.subr.bf16.mxu0 %v1074
    %1441 = vmatpush1.bf16.msra.mxu0 %v1073
    %1442 = vmatprep.subr.bf16.mxu0 %v1066
    %1443 = vmatpush1.bf16.msra.mxu0 %v1065
    %1444 = vmatprep.subr.bf16.mxu0 %v1058
    %1445 = vmatpush1.bf16.msra.mxu0 %v1057
    %1446 = vmatprep.subr.bf16.mxu0 %v1050
    %1447 = vmatpush1.bf16.msra.mxu0 %v1049
    %1448 = vmatprep.subr.bf16.mxu0 0
    %1449 = vmatpush2.bf16.msra.mxu0 0
    %1450 = vmatprep.subr.bf16.mxu0 0
    %1451 = vmatpush2.bf16.msra.mxu0 0
    %1452 = vmatprep.subr.bf16.mxu0 0
    %1453 = vmatpush2.bf16.msra.mxu0 0
    %1454 = vmatprep.subr.bf16.mxu0 0
    %1455 = vmatpush2.bf16.msra.mxu0 0
    %1456 = vmatprep.subr.bf16.mxu0 0
    %1457 = vmatpush2.bf16.msra.mxu0 0
    %1458 = vmatprep.subr.bf16.mxu0 0
    %1459 = vmatpush2.bf16.msra.mxu0 0
    %1460 = vmatprep.subr.bf16.mxu0 0
    %1461 = vmatpush2.bf16.msra.mxu0 0
    %1462 = vmatprep.subr.bf16.mxu0 0
    %1463 = vmatpush2.bf16.msra.mxu0 0
    %1464 = vmatprep.mubr.bf16.mxu0 0
    %1465 = vmatmul.mubr.bf16.gmra.mxu0 %v108
    %v1466 = vpop.f32.mrf.mxu0
    %v1467 = vadd.f32 %v1424, %v1466
    %v1468 = vpop.f32.mrf.mxu0
    %v1469 = vadd.f32 %v1426, %v1468
    %v1470 = vpop.f32.mrf.mxu0
    %v1471 = vadd.f32 %v1428, %v1470
    %v1472 = vpop.f32.mrf.mxu0
    %v1473 = vadd.f32 %v1430, %v1472
    %1474 = vdwg.mxu0
    %1475 = vmatprep.subr.bf16.mxu0 %v980
    %1476 = vmatpush1.bf16.msra.mxu0 %v979
    %1477 = vmatprep.subr.bf16.mxu0 %v972
    %1478 = vmatpush1.bf16.msra.mxu0 %v971
    %1479 = vmatprep.subr.bf16.mxu0 %v964
    %1480 = vmatpush1.bf16.msra.mxu0 %v963
    %1481 = vmatprep.subr.bf16.mxu0 %v956
    %1482 = vmatpush1.bf16.msra.mxu0 %v955
    %1483 = vmatprep.subr.bf16.mxu0 %v948
    %1484 = vmatpush1.bf16.msra.mxu0 %v947
    %1485 = vmatprep.subr.bf16.mxu0 %v940
    %1486 = vmatpush1.bf16.msra.mxu0 %v939
    %1487 = vmatprep.subr.bf16.mxu0 %v932
    %1488 = vmatpush1.bf16.msra.mxu0 %v931
    %1489 = vmatprep.subr.bf16.mxu0 %v924
    %1490 = vmatpush1.bf16.msra.mxu0 %v923
    %1491 = vmatprep.subr.bf16.mxu0 %v1044
    %1492 = vmatpush2.bf16.msra.mxu0 %v1043
    %1493 = vmatprep.subr.bf16.mxu0 %v1036
    %1494 = vmatpush2.bf16.msra.mxu0 %v1035
    %1495 = vmatprep.subr.bf16.mxu0 %v1028
    %1496 = vmatpush2.bf16.msra.mxu0 %v1027
    %1497 = vmatprep.subr.bf16.mxu0 %v1020
    %1498 = vmatpush2.bf16.msra.mxu0 %v1019
    %1499 = vmatprep.subr.bf16.mxu0 %v1012
    %1500 = vmatpush2.bf16.msra.mxu0 %v1011
    %1501 = vmatprep.subr.bf16.mxu0 %v1004
    %1502 = vmatpush2.bf16.msra.mxu0 %v1003
    %1503 = vmatprep.subr.bf16.mxu0 %v996
    %1504 = vmatpush2.bf16.msra.mxu0 %v995
    %1505 = vmatprep.subr.bf16.mxu0 %v988
    %1506 = vmatpush2.bf16.msra.mxu0 %v987
    %1507 = vmatprep.mubr.bf16.mxu0 %v107
    %1508 = vmatmul.mubr.bf16.gmra.mxu0 %v106
    %v1509 = vpop.f32.mrf.mxu0
    %v1510 = vadd.f32 %v322, %v1509
    %v1511 = vpop.f32.mrf.mxu0
    %v1512 = vadd.f32 %v326, %v1511
    %v1513 = vpop.f32.mrf.mxu0
    %v1514 = vadd.f32 %v322, %v1513
    %v1515 = vpop.f32.mrf.mxu0
    %v1516 = vadd.f32 %v326, %v1515
    %1517 = vdwg.mxu0
    %1518 = vmatprep.subr.bf16.mxu0 %v1108
    %1519 = vmatpush1.bf16.msra.mxu0 %v1107
    %1520 = vmatprep.subr.bf16.mxu0 %v1100
    %1521 = vmatpush1.bf16.msra.mxu0 %v1099
    %1522 = vmatprep.subr.bf16.mxu0 %v1092
    %1523 = vmatpush1.bf16.msra.mxu0 %v1091
    %1524 = vmatprep.subr.bf16.mxu0 %v1084
    %1525 = vmatpush1.bf16.msra.mxu0 %v1083
    %1526 = vmatprep.subr.bf16.mxu0 %v1076
    %1527 = vmatpush1.bf16.msra.mxu0 %v1075
    %1528 = vmatprep.subr.bf16.mxu0 %v1068
    %1529 = vmatpush1.bf16.msra.mxu0 %v1067
    %1530 = vmatprep.subr.bf16.mxu0 %v1060
    %1531 = vmatpush1.bf16.msra.mxu0 %v1059
    %1532 = vmatprep.subr.bf16.mxu0 %v1052
    %1533 = vmatpush1.bf16.msra.mxu0 %v1051
    %1534 = vmatprep.subr.bf16.mxu0 0
    %1535 = vmatpush2.bf16.msra.mxu0 0
    %1536 = vmatprep.subr.bf16.mxu0 0
    %1537 = vmatpush2.bf16.msra.mxu0 0
    %1538 = vmatprep.subr.bf16.mxu0 0
    %1539 = vmatpush2.bf16.msra.mxu0 0
    %1540 = vmatprep.subr.bf16.mxu0 0
    %1541 = vmatpush2.bf16.msra.mxu0 0
    %1542 = vmatprep.subr.bf16.mxu0 0
    %1543 = vmatpush2.bf16.msra.mxu0 0
    %1544 = vmatprep.subr.bf16.mxu0 0
    %1545 = vmatpush2.bf16.msra.mxu0 0
    %1546 = vmatprep.subr.bf16.mxu0 0
    %1547 = vmatpush2.bf16.msra.mxu0 0
    %1548 = vmatprep.subr.bf16.mxu0 0
    %1549 = vmatpush2.bf16.msra.mxu0 0
    %1550 = vmatprep.mubr.bf16.mxu0 0
    %1551 = vmatmul.mubr.bf16.gmra.mxu0 %v108
    %v1552 = vpop.f32.mrf.mxu0
    %v1553 = vadd.f32 %v1510, %v1552
    %v1554 = vpop.f32.mrf.mxu0
    %v1555 = vadd.f32 %v1512, %v1554
    %v1556 = vpop.f32.mrf.mxu0
    %v1557 = vadd.f32 %v1514, %v1556
    %v1558 = vpop.f32.mrf.mxu0
    %v1559 = vadd.f32 %v1516, %v1558
    %1560 = vdwg.mxu0
    %1561 = vmatprep.subr.bf16.mxu0 %v982
    %1562 = vmatpush1.bf16.msra.mxu0 %v981
    %1563 = vmatprep.subr.bf16.mxu0 %v974
    %1564 = vmatpush1.bf16.msra.mxu0 %v973
    %1565 = vmatprep.subr.bf16.mxu0 %v966
    %1566 = vmatpush1.bf16.msra.mxu0 %v965
    %1567 = vmatprep.subr.bf16.mxu0 %v958
    %1568 = vmatpush1.bf16.msra.mxu0 %v957
    %1569 = vmatprep.subr.bf16.mxu0 %v950
    %1570 = vmatpush1.bf16.msra.mxu0 %v949
    %1571 = vmatprep.subr.bf16.mxu0 %v942
    %1572 = vmatpush1.bf16.msra.mxu0 %v941
    %1573 = vmatprep.subr.bf16.mxu0 %v934
    %1574 = vmatpush1.bf16.msra.mxu0 %v933
    %1575 = vmatprep.subr.bf16.mxu0 %v926
    %1576 = vmatpush1.bf16.msra.mxu0 %v925
    %1577 = vmatprep.subr.bf16.mxu0 %v1046
    %1578 = vmatpush2.bf16.msra.mxu0 %v1045
    %1579 = vmatprep.subr.bf16.mxu0 %v1038
    %1580 = vmatpush2.bf16.msra.mxu0 %v1037
    %1581 = vmatprep.subr.bf16.mxu0 %v1030
    %1582 = vmatpush2.bf16.msra.mxu0 %v1029
    %1583 = vmatprep.subr.bf16.mxu0 %v1022
    %1584 = vmatpush2.bf16.msra.mxu0 %v1021
    %1585 = vmatprep.subr.bf16.mxu0 %v1014
    %1586 = vmatpush2.bf16.msra.mxu0 %v1013
    %1587 = vmatprep.subr.bf16.mxu0 %v1006
    %1588 = vmatpush2.bf16.msra.mxu0 %v1005
    %1589 = vmatprep.subr.bf16.mxu0 %v998
    %1590 = vmatpush2.bf16.msra.mxu0 %v997
    %1591 = vmatprep.subr.bf16.mxu0 %v990
    %1592 = vmatpush2.bf16.msra.mxu0 %v989
    %1593 = vmatprep.mubr.bf16.mxu0 %v107
    %1594 = vmatmul.mubr.bf16.gmra.mxu0 %v106
    %v1595 = vpop.f32.mrf.mxu0
    %v1596 = vadd.f32 %v330, %v1595
    %v1597 = vpop.f32.mrf.mxu0
    %v1598 = vadd.f32 %v334, %v1597
    %v1599 = vpop.f32.mrf.mxu0
    %v1600 = vadd.f32 %v330, %v1599
    %v1601 = vpop.f32.mrf.mxu0
    %v1602 = vadd.f32 %v334, %v1601
    %1603 = vdwg.mxu0
    %1604 = vmatprep.subr.bf16.mxu0 %v1110
    %1605 = vmatpush1.bf16.msra.mxu0 %v1109
    %1606 = vmatprep.subr.bf16.mxu0 %v1102
    %1607 = vmatpush1.bf16.msra.mxu0 %v1101
    %1608 = vmatprep.subr.bf16.mxu0 %v1094
    %1609 = vmatpush1.bf16.msra.mxu0 %v1093
    %1610 = vmatprep.subr.bf16.mxu0 %v1086
    %1611 = vmatpush1.bf16.msra.mxu0 %v1085
    %1612 = vmatprep.subr.bf16.mxu0 %v1078
    %1613 = vmatpush1.bf16.msra.mxu0 %v1077
    %1614 = vmatprep.subr.bf16.mxu0 %v1070
    %1615 = vmatpush1.bf16.msra.mxu0 %v1069
    %1616 = vmatprep.subr.bf16.mxu0 %v1062
    %1617 = vmatpush1.bf16.msra.mxu0 %v1061
    %1618 = vmatprep.subr.bf16.mxu0 %v1054
    %1619 = vmatpush1.bf16.msra.mxu0 %v1053
    %1620 = vmatprep.subr.bf16.mxu0 0
    %1621 = vmatpush2.bf16.msra.mxu0 0
    %1622 = vmatprep.subr.bf16.mxu0 0
    %1623 = vmatpush2.bf16.msra.mxu0 0
    %1624 = vmatprep.subr.bf16.mxu0 0
    %1625 = vmatpush2.bf16.msra.mxu0 0
    %1626 = vmatprep.subr.bf16.mxu0 0
    %1627 = vmatpush2.bf16.msra.mxu0 0
    %1628 = vmatprep.subr.bf16.mxu0 0
    %1629 = vmatpush2.bf16.msra.mxu0 0
    %1630 = vmatprep.subr.bf16.mxu0 0
    %1631 = vmatpush2.bf16.msra.mxu0 0
    %1632 = vmatprep.subr.bf16.mxu0 0
    %1633 = vmatpush2.bf16.msra.mxu0 0
    %1634 = vmatprep.subr.bf16.mxu0 0
    %1635 = vmatpush2.bf16.msra.mxu0 0
    %1636 = vmatprep.mubr.bf16.mxu0 0
    %1637 = vmatmul.mubr.bf16.gmra.mxu0 %v108
    %v1638 = vpop.f32.mrf.mxu0
    %v1639 = vadd.f32 %v1596, %v1638
    %v1640 = vpop.f32.mrf.mxu0
    %v1641 = vadd.f32 %v1598, %v1640
    %v1642 = vpop.f32.mrf.mxu0
    %v1643 = vadd.f32 %v1600, %v1642
    %v1644 = vpop.f32.mrf.mxu0
    %v1645 = vadd.f32 %v1602, %v1644
    %1646 = vdwg.mxu0
    %v1647 = vmul.f32 %v1381, 0.01
    %v1648 = vmul.f32 %v1383, 0.01
    %v1649 = vmul.f32 %v1467, 0.01
    %v1650 = vmul.f32 %v1469, 0.01
    %v1651 = vmul.f32 %v1553, 0.01
    %v1652 = vmul.f32 %v1555, 0.01
    %v1653 = vmul.f32 %v1639, 0.01
    %v1654 = vmul.f32 %v1641, 0.01
    %v1655 = vmul.f32 %v1385, 0.01
    %v1656 = vmul.f32 %v1387, 0.01
    %v1657 = vmul.f32 %v1471, 0.01
    %v1658 = vmul.f32 %v1473, 0.01
    %v1659 = vmul.f32 %v1557, 0.01
    %v1660 = vmul.f32 %v1559, 0.01
    %v1661 = vmul.f32 %v1643, 0.01
    %v1662 = vmul.f32 %v1645, 0.01
    %v1663 = vmax.f32 %v1381, %v1647
    %v1664 = vmax.f32 %v1383, %v1648
    %v1665 = vmax.f32 %v1467, %v1649
    %v1666 = vmax.f32 %v1469, %v1650
    %v1667 = vmax.f32 %v1553, %v1651
    %v1668 = vmax.f32 %v1555, %v1652
    %v1669 = vmax.f32 %v1639, %v1653
    %v1670 = vmax.f32 %v1641, %v1654
    %v1671 = vmax.f32 %v1385, %v1655
    %v1672 = vmax.f32 %v1387, %v1656
    %v1673 = vmax.f32 %v1471, %v1657
    %v1674 = vmax.f32 %v1473, %v1658
    %v1675 = vmax.f32 %v1557, %v1659
    %v1676 = vmax.f32 %v1559, %v1660
    %v1677 = vmax.f32 %v1643, %v1661
    %v1678 = vmax.f32 %v1645, %v1662
    %v1679 = vpack.c.bf16 %v1671, %v1663
    %v1680 = vpack.c.bf16 %v1672, %v1664
    %v1681 = vpack.c.bf16 %v1673, %v1665
    %v1682 = vpack.c.bf16 %v1674, %v1666
    %v1683 = vpack.c.bf16 %v1675, %v1667
    %v1684 = vpack.c.bf16 %v1676, %v1668
    %v1685 = vpack.c.bf16 %v1677, %v1669
    %v1686 = vpack.c.bf16 %v1678, %v1670
    %v1687 = vld [vmem:[#allocation8] sm:$0xf]
    %v1688 = vld [vmem:[#allocation8 + $0x4] sm:$0xf]
    %v1689 = vld [vmem:[#allocation8 + $0x8] sm:$0xf]
    %v1690 = vld [vmem:[#allocation8 + $0xc] sm:$0xf]
    %v1691 = vld [vmem:[#allocation8 + $0x10] sm:$0xf]
    %v1692 = vld [vmem:[#allocation8 + $0x14] sm:$0xf]
    %v1693 = vld [vmem:[#allocation8 + $0x18] sm:$0xf]
    %v1694 = vld [vmem:[#allocation8 + $0x1c] sm:$0xf]
    %v1695 = vld [vmem:[#allocation8 + $0x20] sm:$0xf]
    %v1696 = vld [vmem:[#allocation8 + $0x24] sm:$0xf]
    %v1697 = vld [vmem:[#allocation8 + $0x28] sm:$0xf]
    %v1698 = vld [vmem:[#allocation8 + $0x2c] sm:$0xf]
    %v1699 = vld [vmem:[#allocation8 + $0x30] sm:$0xf]
    %v1700 = vld [vmem:[#allocation8 + $0x34] sm:$0xf]
    %v1701 = vld [vmem:[#allocation8 + $0x38] sm:$0xf]
    %v1702 = vld [vmem:[#allocation8 + $0x3c] sm:$0xf]
    %v1703 = vld [vmem:[#allocation8 + $0x40] sm:$0xf]
    %v1704 = vld [vmem:[#allocation8 + $0x44] sm:$0xf]
    %v1705 = vld [vmem:[#allocation8 + $0x48] sm:$0xf]
    %v1706 = vld [vmem:[#allocation8 + $0x4c] sm:$0xf]
    %v1707 = vld [vmem:[#allocation8 + $0x50] sm:$0xf]
    %v1708 = vld [vmem:[#allocation8 + $0x54] sm:$0xf]
    %v1709 = vld [vmem:[#allocation8 + $0x58] sm:$0xf]
    %v1710 = vld [vmem:[#allocation8 + $0x5c] sm:$0xf]
    %v1711 = vld [vmem:[#allocation8 + $0x60] sm:$0xf]
    %v1712 = vld [vmem:[#allocation8 + $0x64] sm:$0xf]
    %v1713 = vld [vmem:[#allocation8 + $0x68] sm:$0xf]
    %v1714 = vld [vmem:[#allocation8 + $0x6c] sm:$0xf]
    %v1715 = vld [vmem:[#allocation8 + $0x70] sm:$0xf]
    %v1716 = vld [vmem:[#allocation8 + $0x74] sm:$0xf]
    %v1717 = vld [vmem:[#allocation8 + $0x78] sm:$0xf]
    %v1718 = vld [vmem:[#allocation8 + $0x7c] sm:$0xf]
    %v1719 = vld [vmem:[#allocation8 + $0x80] sm:$0xf]
    %v1720 = vld [vmem:[#allocation8 + $0x84] sm:$0xf]
    %v1721 = vld [vmem:[#allocation8 + $0x88] sm:$0xf]
    %v1722 = vld [vmem:[#allocation8 + $0x8c] sm:$0xf]
    %v1723 = vld [vmem:[#allocation8 + $0x90] sm:$0xf]
    %v1724 = vld [vmem:[#allocation8 + $0x94] sm:$0xf]
    %v1725 = vld [vmem:[#allocation8 + $0x98] sm:$0xf]
    %v1726 = vld [vmem:[#allocation8 + $0x9c] sm:$0xf]
    %v1727 = vld [vmem:[#allocation8 + $0xa0] sm:$0xf]
    %v1728 = vld [vmem:[#allocation8 + $0xa4] sm:$0xf]
    %v1729 = vld [vmem:[#allocation8 + $0xa8] sm:$0xf]
    %v1730 = vld [vmem:[#allocation8 + $0xac] sm:$0xf]
    %v1731 = vld [vmem:[#allocation8 + $0xb0] sm:$0xf]
    %v1732 = vld [vmem:[#allocation8 + $0xb4] sm:$0xf]
    %v1733 = vld [vmem:[#allocation8 + $0xb8] sm:$0xf]
    %v1734 = vld [vmem:[#allocation8 + $0xbc] sm:$0xf]
    %v1735 = vld [vmem:[#allocation8 + $0xc0] sm:$0xf]
    %v1736 = vld [vmem:[#allocation8 + $0xc4] sm:$0xf]
    %v1737 = vld [vmem:[#allocation8 + $0xc8] sm:$0xf]
    %v1738 = vld [vmem:[#allocation8 + $0xcc] sm:$0xf]
    %v1739 = vld [vmem:[#allocation8 + $0xd0] sm:$0xf]
    %v1740 = vld [vmem:[#allocation8 + $0xd4] sm:$0xf]
    %v1741 = vld [vmem:[#allocation8 + $0xd8] sm:$0xf]
    %v1742 = vld [vmem:[#allocation8 + $0xdc] sm:$0xf]
    %v1743 = vld [vmem:[#allocation8 + $0xe0] sm:$0xf]
    %v1744 = vld [vmem:[#allocation8 + $0xe4] sm:$0xf]
    %v1745 = vld [vmem:[#allocation8 + $0xe8] sm:$0xf]
    %v1746 = vld [vmem:[#allocation8 + $0xec] sm:$0xf]
    %v1747 = vld [vmem:[#allocation8 + $0xf0] sm:$0xf]
    %v1748 = vld [vmem:[#allocation8 + $0xf4] sm:$0xf]
    %v1749 = vld [vmem:[#allocation8 + $0xf8] sm:$0xf]
    %v1750 = vld [vmem:[#allocation8 + $0xfc] sm:$0xf]
    %v1751 = vld [vmem:[#allocation8 + $0x100] sm:$0xf]
    %v1752 = vld [vmem:[#allocation8 + $0x104] sm:$0xf]
    %v1753 = vld [vmem:[#allocation8 + $0x108] sm:$0xf]
    %v1754 = vld [vmem:[#allocation8 + $0x10c] sm:$0xf]
    %v1755 = vld [vmem:[#allocation8 + $0x110] sm:$0xf]
    %v1756 = vld [vmem:[#allocation8 + $0x114] sm:$0xf]
    %v1757 = vld [vmem:[#allocation8 + $0x118] sm:$0xf]
    %v1758 = vld [vmem:[#allocation8 + $0x11c] sm:$0xf]
    %v1759 = vld [vmem:[#allocation8 + $0x120] sm:$0xf]
    %v1760 = vld [vmem:[#allocation8 + $0x124] sm:$0xf]
    %v1761 = vld [vmem:[#allocation8 + $0x128] sm:$0xf]
    %v1762 = vld [vmem:[#allocation8 + $0x12c] sm:$0xf]
    %v1763 = vld [vmem:[#allocation8 + $0x130] sm:$0xf]
    %v1764 = vld [vmem:[#allocation8 + $0x134] sm:$0xf]
    %v1765 = vld [vmem:[#allocation8 + $0x138] sm:$0xf]
    %v1766 = vld [vmem:[#allocation8 + $0x13c] sm:$0xf]
    %v1767 = vld [vmem:[#allocation8 + $0x140] sm:$0xf]
    %v1768 = vld [vmem:[#allocation8 + $0x144] sm:$0xf]
    %v1769 = vld [vmem:[#allocation8 + $0x148] sm:$0xf]
    %v1770 = vld [vmem:[#allocation8 + $0x14c] sm:$0xf]
    %v1771 = vld [vmem:[#allocation8 + $0x150] sm:$0xf]
    %v1772 = vld [vmem:[#allocation8 + $0x154] sm:$0xf]
    %v1773 = vld [vmem:[#allocation8 + $0x158] sm:$0xf]
    %v1774 = vld [vmem:[#allocation8 + $0x15c] sm:$0xf]
    %v1775 = vld [vmem:[#allocation8 + $0x160] sm:$0xf]
    %v1776 = vld [vmem:[#allocation8 + $0x164] sm:$0xf]
    %v1777 = vld [vmem:[#allocation8 + $0x168] sm:$0xf]
    %v1778 = vld [vmem:[#allocation8 + $0x16c] sm:$0xf]
    %v1779 = vld [vmem:[#allocation8 + $0x170] sm:$0xf]
    %v1780 = vld [vmem:[#allocation8 + $0x174] sm:$0xf]
    %v1781 = vld [vmem:[#allocation8 + $0x178] sm:$0xf]
    %v1782 = vld [vmem:[#allocation8 + $0x17c] sm:$0xf]
    %v1783 = vld [vmem:[#allocation8 + $0x180] sm:$0xf]
    %v1784 = vld [vmem:[#allocation8 + $0x184] sm:$0xf]
    %v1785 = vld [vmem:[#allocation8 + $0x188] sm:$0xf]
    %v1786 = vld [vmem:[#allocation8 + $0x18c] sm:$0xf]
    %v1787 = vld [vmem:[#allocation8 + $0x190] sm:$0xf]
    %v1788 = vld [vmem:[#allocation8 + $0x194] sm:$0xf]
    %v1789 = vld [vmem:[#allocation8 + $0x198] sm:$0xf]
    %v1790 = vld [vmem:[#allocation8 + $0x19c] sm:$0xf]
    %v1791 = vld [vmem:[#allocation8 + $0x1a0] sm:$0xf]
    %v1792 = vld [vmem:[#allocation8 + $0x1a4] sm:$0xf]
    %v1793 = vld [vmem:[#allocation8 + $0x1a8] sm:$0xf]
    %v1794 = vld [vmem:[#allocation8 + $0x1ac] sm:$0xf]
    %v1795 = vld [vmem:[#allocation8 + $0x1b0] sm:$0xf]
    %v1796 = vld [vmem:[#allocation8 + $0x1b4] sm:$0xf]
    %v1797 = vld [vmem:[#allocation8 + $0x1b8] sm:$0xf]
    %v1798 = vld [vmem:[#allocation8 + $0x1bc] sm:$0xf]
    %v1799 = vld [vmem:[#allocation8 + $0x1c0] sm:$0xf]
    %v1800 = vld [vmem:[#allocation8 + $0x1c4] sm:$0xf]
    %v1801 = vld [vmem:[#allocation8 + $0x1c8] sm:$0xf]
    %v1802 = vld [vmem:[#allocation8 + $0x1cc] sm:$0xf]
    %v1803 = vld [vmem:[#allocation8 + $0x1d0] sm:$0xf]
    %v1804 = vld [vmem:[#allocation8 + $0x1d4] sm:$0xf]
    %v1805 = vld [vmem:[#allocation8 + $0x1d8] sm:$0xf]
    %v1806 = vld [vmem:[#allocation8 + $0x1dc] sm:$0xf]
    %v1807 = vld [vmem:[#allocation8 + $0x1e0] sm:$0xf]
    %v1808 = vld [vmem:[#allocation8 + $0x1e4] sm:$0xf]
    %v1809 = vld [vmem:[#allocation8 + $0x1e8] sm:$0xf]
    %v1810 = vld [vmem:[#allocation8 + $0x1ec] sm:$0xf]
    %v1811 = vld [vmem:[#allocation8 + $0x1f0] sm:$0xf]
    %v1812 = vld [vmem:[#allocation8 + $0x1f4] sm:$0xf]
    %v1813 = vld [vmem:[#allocation8 + $0x1f8] sm:$0xf]
    %v1814 = vld [vmem:[#allocation8 + $0x1fc] sm:$0xf]
    %v1943 = vunpack.c.l.b16 %v1687
    %v1944 = vunpack.c.l.b16 %v1688
    %v1945 = vunpack.c.l.b16 %v1689
    %v1946 = vunpack.c.l.b16 %v1690
    %v1947 = vunpack.c.l.b16 %v1691
    %v1948 = vunpack.c.l.b16 %v1692
    %v1949 = vunpack.c.l.b16 %v1693
    %v1950 = vunpack.c.l.b16 %v1694
    %v1951 = vunpack.c.l.b16 %v1695
    %v1952 = vunpack.c.l.b16 %v1696
    %v1953 = vunpack.c.l.b16 %v1697
    %v1954 = vunpack.c.l.b16 %v1698
    %v1955 = vunpack.c.l.b16 %v1699
    %v1956 = vunpack.c.l.b16 %v1700
    %v1957 = vunpack.c.l.b16 %v1701
    %v1958 = vunpack.c.l.b16 %v1702
    %v1959 = vunpack.c.l.b16 %v1703
    %v1960 = vunpack.c.l.b16 %v1704
    %v1961 = vunpack.c.l.b16 %v1705
    %v1962 = vunpack.c.l.b16 %v1706
    %v1963 = vunpack.c.l.b16 %v1707
    %v1964 = vunpack.c.l.b16 %v1708
    %v1965 = vunpack.c.l.b16 %v1709
    %v1966 = vunpack.c.l.b16 %v1710
    %v1967 = vunpack.c.l.b16 %v1711
    %v1968 = vunpack.c.l.b16 %v1712
    %v1969 = vunpack.c.l.b16 %v1713
    %v1970 = vunpack.c.l.b16 %v1714
    %v1971 = vunpack.c.l.b16 %v1715
    %v1972 = vunpack.c.l.b16 %v1716
    %v1973 = vunpack.c.l.b16 %v1717
    %v1974 = vunpack.c.l.b16 %v1718
    %v1975 = vunpack.c.l.b16 %v1719
    %v1976 = vunpack.c.l.b16 %v1720
    %v1977 = vunpack.c.l.b16 %v1721
    %v1978 = vunpack.c.l.b16 %v1722
    %v1979 = vunpack.c.l.b16 %v1723
    %v1980 = vunpack.c.l.b16 %v1724
    %v1981 = vunpack.c.l.b16 %v1725
    %v1982 = vunpack.c.l.b16 %v1726
    %v1983 = vunpack.c.l.b16 %v1727
    %v1984 = vunpack.c.l.b16 %v1728
    %v1985 = vunpack.c.l.b16 %v1729
    %v1986 = vunpack.c.l.b16 %v1730
    %v1987 = vunpack.c.l.b16 %v1731
    %v1988 = vunpack.c.l.b16 %v1732
    %v1989 = vunpack.c.l.b16 %v1733
    %v1990 = vunpack.c.l.b16 %v1734
    %v1991 = vunpack.c.l.b16 %v1735
    %v1992 = vunpack.c.l.b16 %v1736
    %v1993 = vunpack.c.l.b16 %v1737
    %v1994 = vunpack.c.l.b16 %v1738
    %v1995 = vunpack.c.l.b16 %v1739
    %v1996 = vunpack.c.l.b16 %v1740
    %v1997 = vunpack.c.l.b16 %v1741
    %v1998 = vunpack.c.l.b16 %v1742
    %v1999 = vunpack.c.l.b16 %v1743
    %v2000 = vunpack.c.l.b16 %v1744
    %v2001 = vunpack.c.l.b16 %v1745
    %v2002 = vunpack.c.l.b16 %v1746
    %v2003 = vunpack.c.l.b16 %v1747
    %v2004 = vunpack.c.l.b16 %v1748
    %v2005 = vunpack.c.l.b16 %v1749
    %v2006 = vunpack.c.l.b16 %v1750
    %v2007 = vunpack.c.l.b16 %v1751
    %v2008 = vunpack.c.l.b16 %v1752
    %v2009 = vunpack.c.l.b16 %v1753
    %v2010 = vunpack.c.l.b16 %v1754
    %v2011 = vunpack.c.l.b16 %v1755
    %v2012 = vunpack.c.l.b16 %v1756
    %v2013 = vunpack.c.l.b16 %v1757
    %v2014 = vunpack.c.l.b16 %v1758
    %v2015 = vunpack.c.l.b16 %v1759
    %v2016 = vunpack.c.l.b16 %v1760
    %v2017 = vunpack.c.l.b16 %v1761
    %v2018 = vunpack.c.l.b16 %v1762
    %v2019 = vunpack.c.l.b16 %v1763
    %v2020 = vunpack.c.l.b16 %v1764
    %v2021 = vunpack.c.l.b16 %v1765
    %v2022 = vunpack.c.l.b16 %v1766
    %v2023 = vunpack.c.l.b16 %v1767
    %v2024 = vunpack.c.l.b16 %v1768
    %v2025 = vunpack.c.l.b16 %v1769
    %v2026 = vunpack.c.l.b16 %v1770
    %v2027 = vunpack.c.l.b16 %v1771
    %v2028 = vunpack.c.l.b16 %v1772
    %v2029 = vunpack.c.l.b16 %v1773
    %v2030 = vunpack.c.l.b16 %v1774
    %v2031 = vunpack.c.l.b16 %v1775
    %v2032 = vunpack.c.l.b16 %v1776
    %v2033 = vunpack.c.l.b16 %v1777
    %v2034 = vunpack.c.l.b16 %v1778
    %v2035 = vunpack.c.l.b16 %v1779
    %v2036 = vunpack.c.l.b16 %v1780
    %v2037 = vunpack.c.l.b16 %v1781
    %v2038 = vunpack.c.l.b16 %v1782
    %v2039 = vunpack.c.l.b16 %v1783
    %v2040 = vunpack.c.l.b16 %v1784
    %v2041 = vunpack.c.l.b16 %v1785
    %v2042 = vunpack.c.l.b16 %v1786
    %v2043 = vunpack.c.l.b16 %v1787
    %v2044 = vunpack.c.l.b16 %v1788
    %v2045 = vunpack.c.l.b16 %v1789
    %v2046 = vunpack.c.l.b16 %v1790
    %v2047 = vunpack.c.l.b16 %v1791
    %v2048 = vunpack.c.l.b16 %v1792
    %v2049 = vunpack.c.l.b16 %v1793
    %v2050 = vunpack.c.l.b16 %v1794
    %v2051 = vunpack.c.l.b16 %v1795
    %v2052 = vunpack.c.l.b16 %v1796
    %v2053 = vunpack.c.l.b16 %v1797
    %v2054 = vunpack.c.l.b16 %v1798
    %v2055 = vunpack.c.l.b16 %v1799
    %v2056 = vunpack.c.l.b16 %v1800
    %v2057 = vunpack.c.l.b16 %v1801
    %v2058 = vunpack.c.l.b16 %v1802
    %v2059 = vunpack.c.l.b16 %v1803
    %v2060 = vunpack.c.l.b16 %v1804
    %v2061 = vunpack.c.l.b16 %v1805
    %v2062 = vunpack.c.l.b16 %v1806
    %v2063 = vunpack.c.l.b16 %v1807
    %v2064 = vunpack.c.l.b16 %v1808
    %v2065 = vunpack.c.l.b16 %v1809
    %v2066 = vunpack.c.l.b16 %v1810
    %v2067 = vunpack.c.l.b16 %v1811
    %v2068 = vunpack.c.l.b16 %v1812
    %v2069 = vunpack.c.l.b16 %v1813
    %v2070 = vunpack.c.l.b16 %v1814
    %v2071 = vpack.c.b16 %v1944, %v1943
    %v2072 = vpack.c.b16 %v1946, %v1945
    %v2073 = vpack.c.b16 %v1948, %v1947
    %v2074 = vpack.c.b16 %v1950, %v1949
    %v2075 = vpack.c.b16 %v1952, %v1951
    %v2076 = vpack.c.b16 %v1954, %v1953
    %v2077 = vpack.c.b16 %v1956, %v1955
    %v2078 = vpack.c.b16 %v1958, %v1957
    %v2079 = vpack.c.b16 %v1960, %v1959
    %v2080 = vpack.c.b16 %v1962, %v1961
    %v2081 = vpack.c.b16 %v1964, %v1963
    %v2082 = vpack.c.b16 %v1966, %v1965
    %v2083 = vpack.c.b16 %v1968, %v1967
    %v2084 = vpack.c.b16 %v1970, %v1969
    %v2085 = vpack.c.b16 %v1972, %v1971
    %v2086 = vpack.c.b16 %v1974, %v1973
    %v2087 = vpack.c.b16 %v1976, %v1975
    %v2088 = vpack.c.b16 %v1978, %v1977
    %v2089 = vpack.c.b16 %v1980, %v1979
    %v2090 = vpack.c.b16 %v1982, %v1981
    %v2091 = vpack.c.b16 %v1984, %v1983
    %v2092 = vpack.c.b16 %v1986, %v1985
    %v2093 = vpack.c.b16 %v1988, %v1987
    %v2094 = vpack.c.b16 %v1990, %v1989
    %v2095 = vpack.c.b16 %v1992, %v1991
    %v2096 = vpack.c.b16 %v1994, %v1993
    %v2097 = vpack.c.b16 %v1996, %v1995
    %v2098 = vpack.c.b16 %v1998, %v1997
    %v2099 = vpack.c.b16 %v2000, %v1999
    %v2100 = vpack.c.b16 %v2002, %v2001
    %v2101 = vpack.c.b16 %v2004, %v2003
    %v2102 = vpack.c.b16 %v2006, %v2005
    %v2103 = vpack.c.b16 %v2008, %v2007
    %v2104 = vpack.c.b16 %v2010, %v2009
    %v2105 = vpack.c.b16 %v2012, %v2011
    %v2106 = vpack.c.b16 %v2014, %v2013
    %v2107 = vpack.c.b16 %v2016, %v2015
    %v2108 = vpack.c.b16 %v2018, %v2017
    %v2109 = vpack.c.b16 %v2020, %v2019
    %v2110 = vpack.c.b16 %v2022, %v2021
    %v2111 = vpack.c.b16 %v2024, %v2023
    %v2112 = vpack.c.b16 %v2026, %v2025
    %v2113 = vpack.c.b16 %v2028, %v2027
    %v2114 = vpack.c.b16 %v2030, %v2029
    %v2115 = vpack.c.b16 %v2032, %v2031
    %v2116 = vpack.c.b16 %v2034, %v2033
    %v2117 = vpack.c.b16 %v2036, %v2035
    %v2118 = vpack.c.b16 %v2038, %v2037
    %v2119 = vpack.c.b16 %v2040, %v2039
    %v2120 = vpack.c.b16 %v2042, %v2041
    %v2121 = vpack.c.b16 %v2044, %v2043
    %v2122 = vpack.c.b16 %v2046, %v2045
    %v2123 = vpack.c.b16 %v2048, %v2047
    %v2124 = vpack.c.b16 %v2050, %v2049
    %v2125 = vpack.c.b16 %v2052, %v2051
    %v2126 = vpack.c.b16 %v2054, %v2053
    %v2127 = vpack.c.b16 %v2056, %v2055
    %v2128 = vpack.c.b16 %v2058, %v2057
    %v2129 = vpack.c.b16 %v2060, %v2059
    %v2130 = vpack.c.b16 %v2062, %v2061
    %v2131 = vpack.c.b16 %v2064, %v2063
    %v2132 = vpack.c.b16 %v2066, %v2065
    %v2133 = vpack.c.b16 %v2068, %v2067
    %v2134 = vpack.c.b16 %v2070, %v2069
    %2199 = vmatprep.subr.bf16.mxu0 0
    %2200 = vmatpush1.bf16.msra.mxu0 %v2078
    %2201 = vmatprep.subr.bf16.mxu0 0
    %2202 = vmatpush1.bf16.msra.mxu0 %v2077
    %2203 = vmatprep.subr.bf16.mxu0 0
    %2204 = vmatpush1.bf16.msra.mxu0 %v2076
    %2205 = vmatprep.subr.bf16.mxu0 0
    %2206 = vmatpush1.bf16.msra.mxu0 %v2075
    %2207 = vmatprep.subr.bf16.mxu0 0
    %2208 = vmatpush1.bf16.msra.mxu0 %v2074
    %2209 = vmatprep.subr.bf16.mxu0 0
    %2210 = vmatpush1.bf16.msra.mxu0 %v2073
    %2211 = vmatprep.subr.bf16.mxu0 0
    %2212 = vmatpush1.bf16.msra.mxu0 %v2072
    %2213 = vmatprep.subr.bf16.mxu0 0
    %2214 = vmatpush1.bf16.msra.mxu0 %v2071
    %2215 = vmatprep.subr.bf16.mxu0 0
    %2216 = vmatpush2.bf16.msra.mxu0 %v2086
    %2217 = vmatprep.subr.bf16.mxu0 0
    %2218 = vmatpush2.bf16.msra.mxu0 %v2085
    %2219 = vmatprep.subr.bf16.mxu0 0
    %2220 = vmatpush2.bf16.msra.mxu0 %v2084
    %2221 = vmatprep.subr.bf16.mxu0 0
    %2222 = vmatpush2.bf16.msra.mxu0 %v2083
    %2223 = vmatprep.subr.bf16.mxu0 0
    %2224 = vmatpush2.bf16.msra.mxu0 %v2082
    %2225 = vmatprep.subr.bf16.mxu0 0
    %2226 = vmatpush2.bf16.msra.mxu0 %v2081
    %2227 = vmatprep.subr.bf16.mxu0 0
    %2228 = vmatpush2.bf16.msra.mxu0 %v2080
    %2229 = vmatprep.subr.bf16.mxu0 0
    %2230 = vmatpush2.bf16.msra.mxu0 %v2079
    %2231 = vmatprep.mubr.bf16.mxu0 %v1680
    %2232 = vmatmul.mubr.bf16.gmra.mxu0 %v1679
    %v2233 = vpop.f32.mrf.mxu0
    %v2234 = vadd.f32 0.0, %v2233
    %v2235 = vpop.f32.mrf.mxu0
    %v2236 = vpop.f32.mrf.mxu0
    %v2237 = vadd.f32 0.0, %v2236
    %v2238 = vpop.f32.mrf.mxu0
    %2239 = vdwg.mxu0
    %2240 = vmatprep.subr.bf16.mxu0 0
    %2241 = vmatpush1.bf16.msra.mxu0 %v2094
    %2242 = vmatprep.subr.bf16.mxu0 0
    %2243 = vmatpush1.bf16.msra.mxu0 %v2093
    %2244 = vmatprep.subr.bf16.mxu0 0
    %2245 = vmatpush1.bf16.msra.mxu0 %v2092
    %2246 = vmatprep.subr.bf16.mxu0 0
    %2247 = vmatpush1.bf16.msra.mxu0 %v2091
    %2248 = vmatprep.subr.bf16.mxu0 0
    %2249 = vmatpush1.bf16.msra.mxu0 %v2090
    %2250 = vmatprep.subr.bf16.mxu0 0
    %2251 = vmatpush1.bf16.msra.mxu0 %v2089
    %2252 = vmatprep.subr.bf16.mxu0 0
    %2253 = vmatpush1.bf16.msra.mxu0 %v2088
    %2254 = vmatprep.subr.bf16.mxu0 0
    %2255 = vmatpush1.bf16.msra.mxu0 %v2087
    %2256 = vmatprep.subr.bf16.mxu0 0
    %2257 = vmatpush2.bf16.msra.mxu0 %v2102
    %2258 = vmatprep.subr.bf16.mxu0 0
    %2259 = vmatpush2.bf16.msra.mxu0 %v2101
    %2260 = vmatprep.subr.bf16.mxu0 0
    %2261 = vmatpush2.bf16.msra.mxu0 %v2100
    %2262 = vmatprep.subr.bf16.mxu0 0
    %2263 = vmatpush2.bf16.msra.mxu0 %v2099
    %2264 = vmatprep.subr.bf16.mxu0 0
    %2265 = vmatpush2.bf16.msra.mxu0 %v2098
    %2266 = vmatprep.subr.bf16.mxu0 0
    %2267 = vmatpush2.bf16.msra.mxu0 %v2097
    %2268 = vmatprep.subr.bf16.mxu0 0
    %2269 = vmatpush2.bf16.msra.mxu0 %v2096
    %2270 = vmatprep.subr.bf16.mxu0 0
    %2271 = vmatpush2.bf16.msra.mxu0 %v2095
    %2272 = vmatprep.mubr.bf16.mxu0 %v1682
    %2273 = vmatmul.mubr.bf16.gmra.mxu0 %v1681
    %v2274 = vpop.f32.mrf.mxu0
    %v2275 = vadd.f32 %v2234, %v2274
    %v2276 = vpop.f32.mrf.mxu0
    %v2277 = vpop.f32.mrf.mxu0
    %v2278 = vadd.f32 %v2237, %v2277
    %v2279 = vpop.f32.mrf.mxu0
    %2280 = vdwg.mxu0
    %2281 = vmatprep.subr.bf16.mxu0 0
    %2282 = vmatpush1.bf16.msra.mxu0 %v2110
    %2283 = vmatprep.subr.bf16.mxu0 0
    %2284 = vmatpush1.bf16.msra.mxu0 %v2109
    %2285 = vmatprep.subr.bf16.mxu0 0
    %2286 = vmatpush1.bf16.msra.mxu0 %v2108
    %2287 = vmatprep.subr.bf16.mxu0 0
    %2288 = vmatpush1.bf16.msra.mxu0 %v2107
    %2289 = vmatprep.subr.bf16.mxu0 0
    %2290 = vmatpush1.bf16.msra.mxu0 %v2106
    %2291 = vmatprep.subr.bf16.mxu0 0
    %2292 = vmatpush1.bf16.msra.mxu0 %v2105
    %2293 = vmatprep.subr.bf16.mxu0 0
    %2294 = vmatpush1.bf16.msra.mxu0 %v2104
    %2295 = vmatprep.subr.bf16.mxu0 0
    %2296 = vmatpush1.bf16.msra.mxu0 %v2103
    %2297 = vmatprep.subr.bf16.mxu0 0
    %2298 = vmatpush2.bf16.msra.mxu0 %v2118
    %2299 = vmatprep.subr.bf16.mxu0 0
    %2300 = vmatpush2.bf16.msra.mxu0 %v2117
    %2301 = vmatprep.subr.bf16.mxu0 0
    %2302 = vmatpush2.bf16.msra.mxu0 %v2116
    %2303 = vmatprep.subr.bf16.mxu0 0
    %2304 = vmatpush2.bf16.msra.mxu0 %v2115
    %2305 = vmatprep.subr.bf16.mxu0 0
    %2306 = vmatpush2.bf16.msra.mxu0 %v2114
    %2307 = vmatprep.subr.bf16.mxu0 0
    %2308 = vmatpush2.bf16.msra.mxu0 %v2113
    %2309 = vmatprep.subr.bf16.mxu0 0
    %2310 = vmatpush2.bf16.msra.mxu0 %v2112
    %2311 = vmatprep.subr.bf16.mxu0 0
    %2312 = vmatpush2.bf16.msra.mxu0 %v2111
    %2313 = vmatprep.mubr.bf16.mxu0 %v1684
    %2314 = vmatmul.mubr.bf16.gmra.mxu0 %v1683
    %v2315 = vpop.f32.mrf.mxu0
    %v2316 = vadd.f32 %v2275, %v2315
    %v2317 = vpop.f32.mrf.mxu0
    %v2318 = vpop.f32.mrf.mxu0
    %v2319 = vadd.f32 %v2278, %v2318
    %v2320 = vpop.f32.mrf.mxu0
    %2321 = vdwg.mxu0
    %2322 = vmatprep.subr.bf16.mxu0 0
    %2323 = vmatpush1.bf16.msra.mxu0 %v2126
    %2324 = vmatprep.subr.bf16.mxu0 0
    %2325 = vmatpush1.bf16.msra.mxu0 %v2125
    %2326 = vmatprep.subr.bf16.mxu0 0
    %2327 = vmatpush1.bf16.msra.mxu0 %v2124
    %2328 = vmatprep.subr.bf16.mxu0 0
    %2329 = vmatpush1.bf16.msra.mxu0 %v2123
    %2330 = vmatprep.subr.bf16.mxu0 0
    %2331 = vmatpush1.bf16.msra.mxu0 %v2122
    %2332 = vmatprep.subr.bf16.mxu0 0
    %2333 = vmatpush1.bf16.msra.mxu0 %v2121
    %2334 = vmatprep.subr.bf16.mxu0 0
    %2335 = vmatpush1.bf16.msra.mxu0 %v2120
    %2336 = vmatprep.subr.bf16.mxu0 0
    %2337 = vmatpush1.bf16.msra.mxu0 %v2119
    %2338 = vmatprep.subr.bf16.mxu0 0
    %2339 = vmatpush2.bf16.msra.mxu0 %v2134
    %2340 = vmatprep.subr.bf16.mxu0 0
    %2341 = vmatpush2.bf16.msra.mxu0 %v2133
    %2342 = vmatprep.subr.bf16.mxu0 0
    %2343 = vmatpush2.bf16.msra.mxu0 %v2132
    %2344 = vmatprep.subr.bf16.mxu0 0
    %2345 = vmatpush2.bf16.msra.mxu0 %v2131
    %2346 = vmatprep.subr.bf16.mxu0 0
    %2347 = vmatpush2.bf16.msra.mxu0 %v2130
    %2348 = vmatprep.subr.bf16.mxu0 0
    %2349 = vmatpush2.bf16.msra.mxu0 %v2129
    %2350 = vmatprep.subr.bf16.mxu0 0
    %2351 = vmatpush2.bf16.msra.mxu0 %v2128
    %2352 = vmatprep.subr.bf16.mxu0 0
    %2353 = vmatpush2.bf16.msra.mxu0 %v2127
    %2354 = vmatprep.mubr.bf16.mxu0 %v1686
    %2355 = vmatmul.mubr.bf16.gmra.mxu0 %v1685
    %v2356 = vpop.f32.mrf.mxu0
    %v2357 = vadd.f32 %v2316, %v2356
    %v2358 = vpop.f32.mrf.mxu0
    %v2359 = vpop.f32.mrf.mxu0
    %v2360 = vadd.f32 %v2319, %v2359
    %v2361 = vpop.f32.mrf.mxu0
    %2362 = vdwg.mxu0
    %v2363 = vld [vmem:[%s4] sm:$0x1]
    %v2365 = vlaneseq
    %v2366 = vshrl.u32 %v2365, 7
    %v2367 = vsub.s32 0, %v2366
    %v2368 = vrot.slane %v2363, %v2367
    %v2370 = vmul.f32 %v2357, %v2368
    %v2371 = vmul.f32 %v2360, %v2368
    %v2372 = vld [vmem:[%s5] sm:$0x1]
    %v2374 = vlaneseq
    %v2375 = vshrl.u32 %v2374, 7
    %v2376 = vsub.s32 0, %v2375
    %v2377 = vrot.slane %v2372, %v2376
    %v2379 = vadd.f32 %v2370, %v2377
    %v2380 = vadd.f32 %v2371, %v2377
    %v2384 = vrot.slane %v78, 1
    %v2385 = vrot.slane %v79, 1
    %v2386 = vsel %vm90, %v2384, %v2385
    %v2387 = vrot.slane %v80, 1
    %v2388 = vsel %vm90, %v2385, %v2387
    %v2391 = vadd.f32 %v2379, %v2386
    %v2392 = vadd.f32 %v2380, %v2388
    %2393 = vst [vmem:[#allocation10] sm:$0xff] %v2391
    %2394 = vst [vmem:[#allocation10 + $0x8] sm:$0xff] %v2392
    // Predicated region
    $region42: #{tpu_custom_call.1} parent=1 // pred_check
      _
    $region43: #{tpu_custom_call.1} parent=1 // pred_check_branch
      %2396 = sbr.rel (0) target = $region45
    $region44: #{tpu_custom_call.1} parent=1 // pred_region
      %s2398 = ssub.s32 256, 256
      %2399 = vsyncadd [#allocation4], %s2398
      %s2400 = sshll.u32 [#allocation10], 4
      %s2401 = int_to_ptr.vmem [resolvable:$true] %s2400
      %2406 = dma.vmem_to_hbm [thread:$0]  %s2401, 256, %s6, [#allocation4], 128, 128, 8
    $region45: #{tpu_custom_call.1} parent=1 // pred_fallthru
      _
    // Predicated region
    $region46: #{tpu_custom_call.1} parent=1 // pred_check
      _
    $region47: #{tpu_custom_call.1} parent=1 // pred_check_branch
      %2408 = sbr.rel (0) target = $region49
    $region48: #{tpu_custom_call.1} parent=1 // pred_region
      %2409 = dma.done [#allocation4], 256
    $region49: #{tpu_custom_call.1} parent=1 // pred_fallthru
      _
    %2410 = vsyncpa [#allocation3], 1
    %2411 = vsyncpa [#allocation6], 1
    %2412 = vsyncpa [#allocation9], 1
    %2413 = vsyncpa [#allocation4], 1

</llo_original>
